<compile_context>
chip_gen: v7x
topology: tpu7x:2x2x1
jax: 0.10.0
libtpu: 0.0.40
codegen_flags: <defaults>
</compile_context>

<pallas_src>
import jax
import jax.numpy as jnp
from jax.experimental import pallas as pl
from jax.experimental.pallas import tpu as pltpu

# ----------------------------- configuration (mirrors __init__) -----------------------------
IN_DIM = 19            # 9 (flattened relative rotation) + 10 (geometric features)
IN_PAD = 32            # IN_DIM zero-padded so d / gd blocks have an aligned lane width
OUT_DIM = 16
NEIGHBOR_HIDDEN = 32
PRIOR_HIDDEN = 32
ENERGY_HIDDEN = 32
N_LAYERS = 2           # each _MLP_net has 3 Linear layers; act_fn = tanh, pool = 'mean'
TILE_PARTICLES = 256   # particles per grid step (clamped to the padded particle count)


def _round_up(x, m):
    return ((x + m - 1) // m) * m


# ----------------------------------- Pallas kernel -------------------------------------------
def _energy_kernel(d_ref,
                   w0c, b0c, w1c, b1c, w2c, b2c, w0ct, w1ct, w2ct,
                   we0, be0, we1, be1, we0t, we1t, we2t, be2,
                   energy_ref, gd_ref):
    # d_ref / gd_ref: (NN, TP, IN_PAD) — neighbor-major so pooling uses tile-aligned rows.
    NN, TP, IP = d_ref.shape
    inv_nn = 1.0 / NN

    # Collapse leading dims: row k*TP + p  <->  (particle p, neighbor slot k). Free reshape.
    X = d_ref[...].reshape(NN * TP, IP)

    # ---- fused neighbors_net + prior_net forward (single wide MLP) ----
    h1 = jnp.tanh(jnp.dot(X, w0c[...], preferred_element_type=jnp.float32) + b0c[...])
    h2 = jnp.tanh(jnp.dot(h1, w1c[...], preferred_element_type=jnp.float32) + b1c[...])
    ysum = jnp.dot(h2, w2c[...], preferred_element_type=jnp.float32) + b2c[...]   # = yn + yp

    # ---- mean pool over neighbors (leading-axis sum of tile-aligned slabs) ----
    pooled = jnp.sum(ysum.reshape(NN, TP, OUT_DIM), axis=0) * inv_nn              # (TP, OUT)

    # ---- energy head ----
    e1 = jnp.tanh(jnp.dot(pooled, we0[...], preferred_element_type=jnp.float32) + be0[...])
    e2 = jnp.tanh(jnp.dot(e1, we1[...], preferred_element_type=jnp.float32) + be1[...])
    energy = jnp.sum(e2 * we2t[...], axis=-1, keepdims=True) + be2[...]            # (TP, 1)
    energy_ref[...] = energy

    # ---- manual backward of sum(energy) w.r.t. X (network part of autograd.grad) ----
    ge1 = jnp.dot((1.0 - e2 * e2) * we2t[...], we1t[...],
                  preferred_element_type=jnp.float32)                              # (TP, EH)
    gpool = jnp.dot(ge1 * (1.0 - e1 * e1), we0t[...],
                    preferred_element_type=jnp.float32)                            # (TP, OUT)
    # The pooled gradient is identical across neighbor slots -> do the W2c^T matmul once,
    # then replicate the (TP, 64) result NN times (saves a factor NN on this MXU call).
    gh2_tile = jnp.dot(gpool * inv_nn, w2ct[...],
                       preferred_element_type=jnp.float32)                         # (TP, 2H)
    gh2 = jnp.concatenate([gh2_tile] * NN, axis=0)                                 # (NN*TP, 2H)

    gh1 = jnp.dot(gh2 * (1.0 - h2 * h2), w1ct[...], preferred_element_type=jnp.float32)
    gX = jnp.dot(gh1 * (1.0 - h1 * h1), w0ct[...], preferred_element_type=jnp.float32)

    gd_ref[...] = gX.reshape(NN, TP, IP)                                           # free split


def _fuse_params(params):
    """Fuse neighbors_net & prior_net into one wide MLP; pre-transpose everything on the host."""
    (wn0, bn0), (wn1, bn1), (wn2, bn2) = params[0:3]
    (wp0, bp0), (wp1, bp1), (wp2, bp2) = params[3:6]
    (we0, be0), (we1, be1), (we2, be2) = params[6:9]

    w0c = jnp.concatenate([wn0, wp0], axis=1)                       # (19, 64)
    w0c = jnp.pad(w0c, ((0, IN_PAD - w0c.shape[0]), (0, 0)))        # (32, 64) zero rows for pad
    b0c = jnp.concatenate([bn0, bp0], axis=1)                       # (1, 64)
    w1c = jnp.block([[wn1, jnp.zeros((wn1.shape[0], wp1.shape[1]), wn1.dtype)],
                     [jnp.zeros((wp1.shape[0], wn1.shape[1]), wp1.dtype), wp1]])   # (64, 64)
    b1c = jnp.concatenate([bn1, bp1], axis=1)                       # (1, 64)
    w2c = jnp.concatenate([wn2, wp2], axis=0)                       # (64, 16): emits yn + yp
    b2c = bn2 + bp2                                                 # (1, 16)

    ws = [w0c, b0c, w1c, b1c, w2c, b2c,
          w0c.T, w1c.T, w2c.T,                                      # pre-transposed (backward)
          we0, be0, we1, be1,
          we0.T, we1.T, we2.T, be2]                                 # we2.T is (1, 32)
    return [w.astype(jnp.float32) for w in ws]


def run_energy_kernel(d, params, *, tile_particles=TILE_PARTICLES):
    """d: (B, N, NN, IN_DIM).  Returns energy (B*N, 1) and d(sumE)/dd (B*N, NN, IN_DIM)."""
    B, N, NN, IN = d.shape
    P = B * N
    TP = min(tile_particles, _round_up(P, 8))         # clamp tile, keep sublane alignment
    P_pad = _round_up(P, TP)                           # remainder padding (no divisibility assert)
    grid = (P_pad // TP,)

    # Neighbor-major layout (NN, P_pad, IN_PAD): rows of one neighbor slot are contiguous,
    # so the in-kernel pool / un-pool are free leading-dim reshapes + adds.
    d_nm = jnp.transpose(d.reshape(P, NN, IN), (1, 0, 2)).astype(jnp.float32)
    d_nm = jnp.pad(d_nm, ((0, 0), (0, P_pad - P), (0, IN_PAD - IN)))

    weights = _fuse_params(params)

    in_specs = [pl.BlockSpec((NN, TP, IN_PAD), lambda p: (0, p, 0))]
    in_specs += [pl.BlockSpec(w.shape, lambda p: (0, 0)) for w in weights]

    out_shape = (jax.ShapeDtypeStruct((P_pad, 1), jnp.float32),
                 jax.ShapeDtypeStruct((NN, P_pad, IN_PAD), jnp.float32))
    out_specs = (pl.BlockSpec((TP, 1), lambda p: (p, 0)),
                 pl.BlockSpec((NN, TP, IN_PAD), lambda p: (0, p, 0)))

    energy, gd = pl.pallas_call(
        _energy_kernel,
        grid=grid,
        in_specs=in_specs,
        out_specs=out_specs,
        out_shape=out_shape,
        compiler_params=pltpu.CompilerParams(dimension_semantics=("parallel",)),
    )(d_nm, *weights)

    energy = energy[:P]                                             # (P, 1)
    grad_d = jnp.transpose(gd[:, :P, :IN], (1, 0, 2))               # (P, NN, IN) — drop padding
    return energy, grad_d


# ------------------------------ plain-JAX glue (features, chain rule) -------------------------
def compute_dr(position, neighbor_list, box_size):
    B = position.shape[0]
    nbr_pos = position[jnp.arange(B)[:, None, None], neighbor_list]      # (B, N, NN, 3)
    dr = nbr_pos - position[:, :, None, :]
    dr = dr - box_size * jnp.round(dr / box_size)                        # minimum image
    return dr


def build_d(dr, orientation_R, neighbor_list):
    """Differentiable feature construction: returns d = cat(R, features), shape (B,N,NN,IN_DIM)."""
    eps = 1e-8
    B = dr.shape[0]
    r = jnp.sqrt(jnp.sum(dr * dr, axis=-1, keepdims=True) + eps)         # (B,N,NN,1)
    u = dr / r
    Ri = orientation_R                                                   # (B,N,3,3)
    Rj = orientation_R[jnp.arange(B)[:, None, None], neighbor_list]      # (B,N,NN,3,3)
    # relative rotation Ri^T Rj, flattened -> 9 features
    R_rel = jnp.einsum('bnqp,bnkqc->bnkpc', Ri, Rj)
    R_rel = R_rel.reshape(R_rel.shape[:3] + (9,))
    u_Ri = jnp.einsum('bnkq,bnqp->bnkp', u, Ri)                          # (B,N,NN,3)
    u_Rj = jnp.einsum('bnkq,bnkqp->bnkp', u, Rj)                         # (B,N,NN,3)
    features = jnp.concatenate([dr, r, u_Ri, u_Rj], axis=-1)             # (B,N,NN,10)
    return jnp.concatenate([R_rel, features], axis=-1)                   # (B,N,NN,19)


def energy_predictor_v2_forward(position, orientation_R, neighbor_list, box_size, params):
    B, N, _ = position.shape
    NN = neighbor_list.shape[-1]

    dr = compute_dr(position, neighbor_list, box_size)                   # (B,N,NN,3)
    d, pullback = jax.vjp(lambda dr_, R_: build_d(dr_, R_, neighbor_list), dr, orientation_R)

    energy_flat, grad_d = run_energy_kernel(d, params)
    predicted_energy = energy_flat.reshape(B, N, 1)
    grad_d = grad_d.reshape(B, N, NN, IN_DIM)

    g_dr, g_R = pullback(grad_d)                                         # chain rule to dr, R
    neighbors_force = -g_dr                                              # (B,N,NN,3)
    predicted_force = jnp.sum(neighbors_force, axis=2)                   # (B,N,3)

    torque_grad = -g_R                                                   # (B,N,3,3)
    predicted_torque = (jnp.cross(torque_grad[..., 0], orientation_R[..., 0])
                        + jnp.cross(torque_grad[..., 1], orientation_R[..., 1])
                        + jnp.cross(torque_grad[..., 2], orientation_R[..., 2]))
    return predicted_force, predicted_torque, predicted_energy


# --------------------------------- reference (pure JAX, for checking) -------------------------
def _mlp_ref(x, layer_params):
    (w0, b0), (w1, b1), (w2, b2) = layer_params
    h = jnp.tanh(x @ w0 + b0)
    h = jnp.tanh(h @ w1 + b1)
    return h @ w2 + b2


def reference_forward(position, orientation_R, neighbor_list, box_size, params):
    dr = compute_dr(position, neighbor_list, box_size)
    pn, pp, pe = params[0:3], params[3:6], params[6:9]

    def total_energy(dr_, R_):
        d = build_d(dr_, R_, neighbor_list)
        feat = jnp.mean(_mlp_ref(d, pn), axis=2) + jnp.mean(_mlp_ref(d, pp), axis=2)
        E = _mlp_ref(feat, pe)
        return jnp.sum(E), E

    (g_dr, g_R), E = jax.grad(total_energy, argnums=(0, 1), has_aux=True)(dr, orientation_R)
    force = jnp.sum(-g_dr, axis=2)
    tg = -g_R
    torque = sum(jnp.cross(tg[..., k], orientation_R[..., k]) for k in range(3))
    return force, torque, E


# ------------------------------------ parameter init ------------------------------------------
def init_params(key):
    dims = [
        (IN_DIM, NEIGHBOR_HIDDEN), (NEIGHBOR_HIDDEN, NEIGHBOR_HIDDEN), (NEIGHBOR_HIDDEN, OUT_DIM),
        (IN_DIM, PRIOR_HIDDEN), (PRIOR_HIDDEN, PRIOR_HIDDEN), (PRIOR_HIDDEN, OUT_DIM),
        (OUT_DIM, ENERGY_HIDDEN), (ENERGY_HIDDEN, ENERGY_HIDDEN), (ENERGY_HIDDEN, 1),
    ]
    params = []
    for i, (fi, fo) in enumerate(dims):
        kw, kb = jax.random.split(jax.random.fold_in(key, i))
        scale = 1.0 / jnp.sqrt(fi)
        w = jax.random.uniform(kw, (fi, fo), jnp.float32, -scale, scale)
        b = jax.random.uniform(kb, (1, fo), jnp.float32, -scale, scale)
        params.append((w, b))
    return params


# ------------------------------------------ main ----------------------------------------------
if __name__ == "__main__":
    key = jax.random.PRNGKey(0)
    B, N, NN = 2, 16, 8
    box_size = jnp.array([6.0, 6.0, 6.0], jnp.float32)

    k1, k2, k3, kp = jax.random.split(key, 4)
    position = jax.random.uniform(k1, (B, N, 3), jnp.float32, 0.0, 6.0)
    orientation_R, _ = jnp.linalg.qr(jax.random.normal(k2, (B, N, 3, 3), jnp.float32))
    orientation_R = orientation_R.astype(jnp.float32)
    neighbor_list = jax.random.randint(k3, (B, N, NN), 0, N).astype(jnp.int32)
    params = init_params(kp)

    force, torque, energy = jax.block_until_ready(
        energy_predictor_v2_forward(position, orientation_R, neighbor_list, box_size, params))

    f_ref, t_ref, e_ref = reference_forward(position, orientation_R, neighbor_list,
                                            box_size, params)
    assert jnp.allclose(energy, e_ref, atol=1e-3, rtol=1e-3)
    assert jnp.allclose(force, f_ref, atol=1e-3, rtol=1e-3)
    assert jnp.allclose(torque, t_ref, atol=1e-3, rtol=1e-3)

    print("KERNEL_OK")
</pallas_src>

<mosaic_0001>
module attributes {stable_mosaic.version = 11 : i64} {
  func.func @_energy_kernel(%arg0: i32, %arg1: memref<8x32x32xf32, #tpu.memory_space<vmem>>, %arg2: memref<32x64xf32, #tpu.memory_space<vmem>>, %arg3: memref<1x64xf32, #tpu.memory_space<vmem>>, %arg4: memref<64x64xf32, #tpu.memory_space<vmem>>, %arg5: memref<1x64xf32, #tpu.memory_space<vmem>>, %arg6: memref<64x16xf32, #tpu.memory_space<vmem>>, %arg7: memref<1x16xf32, #tpu.memory_space<vmem>>, %arg8: memref<64x32xf32, #tpu.memory_space<vmem>>, %arg9: memref<64x64xf32, #tpu.memory_space<vmem>>, %arg10: memref<16x64xf32, #tpu.memory_space<vmem>>, %arg11: memref<16x32xf32, #tpu.memory_space<vmem>>, %arg12: memref<1x32xf32, #tpu.memory_space<vmem>>, %arg13: memref<32x32xf32, #tpu.memory_space<vmem>>, %arg14: memref<1x32xf32, #tpu.memory_space<vmem>>, %arg15: memref<32x16xf32, #tpu.memory_space<vmem>>, %arg16: memref<32x32xf32, #tpu.memory_space<vmem>>, %arg17: memref<1x32xf32, #tpu.memory_space<vmem>>, %arg18: memref<1x1xf32, #tpu.memory_space<vmem>>, %arg19: memref<32x1xf32, #tpu.memory_space<vmem>>, %arg20: memref<8x32x32xf32, #tpu.memory_space<vmem>>) attributes {dimension_semantics = [#tpu.dimension_semantics<parallel>], iteration_bounds = array<i64: 1>, scalar_prefetch = 0 : i64, scratch_operands = 0 : i64, tpu.core_type = #tpu.core_type<tc>, window_params = [{transform_indices = @transform_0, window_bounds = array<i64: 8, 32, 32>}, {pipeline_mode = #tpu.pipeline_mode<synchronous>, transform_indices = @transform_1, window_bounds = array<i64: 32, 64>}, {pipeline_mode = #tpu.pipeline_mode<synchronous>, transform_indices = @transform_2, window_bounds = array<i64: 1, 64>}, {pipeline_mode = #tpu.pipeline_mode<synchronous>, transform_indices = @transform_3, window_bounds = array<i64: 64, 64>}, {pipeline_mode = #tpu.pipeline_mode<synchronous>, transform_indices = @transform_4, window_bounds = array<i64: 1, 64>}, {pipeline_mode = #tpu.pipeline_mode<synchronous>, transform_indices = @transform_5, window_bounds = array<i64: 64, 16>}, {pipeline_mode = #tpu.pipeline_mode<synchronous>, transform_indices = @transform_6, window_bounds = array<i64: 1, 16>}, {pipeline_mode = #tpu.pipeline_mode<synchronous>, transform_indices = @transform_7, window_bounds = array<i64: 64, 32>}, {pipeline_mode = #tpu.pipeline_mode<synchronous>, transform_indices = @transform_8, window_bounds = array<i64: 64, 64>}, {pipeline_mode = #tpu.pipeline_mode<synchronous>, transform_indices = @transform_9, window_bounds = array<i64: 16, 64>}, {pipeline_mode = #tpu.pipeline_mode<synchronous>, transform_indices = @transform_10, window_bounds = array<i64: 16, 32>}, {pipeline_mode = #tpu.pipeline_mode<synchronous>, transform_indices = @transform_11, window_bounds = array<i64: 1, 32>}, {pipeline_mode = #tpu.pipeline_mode<synchronous>, transform_indices = @transform_12, window_bounds = array<i64: 32, 32>}, {pipeline_mode = #tpu.pipeline_mode<synchronous>, transform_indices = @transform_13, window_bounds = array<i64: 1, 32>}, {pipeline_mode = #tpu.pipeline_mode<synchronous>, transform_indices = @transform_14, window_bounds = array<i64: 32, 16>}, {pipeline_mode = #tpu.pipeline_mode<synchronous>, transform_indices = @transform_15, window_bounds = array<i64: 32, 32>}, {pipeline_mode = #tpu.pipeline_mode<synchronous>, transform_indices = @transform_16, window_bounds = array<i64: 1, 32>}, {pipeline_mode = #tpu.pipeline_mode<synchronous>, transform_indices = @transform_17, window_bounds = array<i64: 1, 1>}, {transform_indices = @transform_18, window_bounds = array<i64: 32, 1>}, {transform_indices = @transform_19, window_bounds = array<i64: 8, 32, 32>}]} {
    %c0 = arith.constant 0 : index
    %c0_0 = arith.constant 0 : index
    %c0_1 = arith.constant 0 : index
    %0 = vector.load %arg1[%c0, %c0_0, %c0_1] : memref<8x32x32xf32, #tpu.memory_space<vmem>>, vector<8x32x32xf32>
    %1 = vector.shape_cast %0 : vector<8x32x32xf32> to vector<256x32xf32>
    %c0_2 = arith.constant 0 : index
    %c0_3 = arith.constant 0 : index
    %2 = vector.load %arg2[%c0_2, %c0_3] : memref<32x64xf32, #tpu.memory_space<vmem>>, vector<32x64xf32>
    %cst = arith.constant dense<0.000000e+00> : vector<256x64xf32>
    %3 = tpu.matmul %1, %2, %cst {dimension_numbers = #tpu.dot_dimension_numbers<[1], [0], [0], [1], [0, 0, 1, 1], [], []>} : vector<256x32xf32>, vector<32x64xf32>, vector<256x64xf32> -> vector<256x64xf32>
    %c0_4 = arith.constant 0 : index
    %c0_5 = arith.constant 0 : index
    %4 = vector.load %arg3[%c0_4, %c0_5] : memref<1x64xf32, #tpu.memory_space<vmem>>, vector<1x64xf32>
    %5 = vector.broadcast %4 : vector<1x64xf32> to vector<256x64xf32>
    %6 = arith.addf %3, %5 : vector<256x64xf32>
    %7 = math.tanh %6 : vector<256x64xf32>
    %c0_6 = arith.constant 0 : index
    %c0_7 = arith.constant 0 : index
    %8 = vector.load %arg4[%c0_6, %c0_7] : memref<64x64xf32, #tpu.memory_space<vmem>>, vector<64x64xf32>
    %cst_8 = arith.constant dense<0.000000e+00> : vector<256x64xf32>
    %9 = tpu.matmul %7, %8, %cst_8 {dimension_numbers = #tpu.dot_dimension_numbers<[1], [0], [0], [1], [0, 0, 1, 1], [], []>} : vector<256x64xf32>, vector<64x64xf32>, vector<256x64xf32> -> vector<256x64xf32>
    %c0_9 = arith.constant 0 : index
    %c0_10 = arith.constant 0 : index
    %10 = vector.load %arg5[%c0_9, %c0_10] : memref<1x64xf32, #tpu.memory_space<vmem>>, vector<1x64xf32>
    %11 = vector.broadcast %10 : vector<1x64xf32> to vector<256x64xf32>
    %12 = arith.addf %9, %11 : vector<256x64xf32>
    %13 = math.tanh %12 : vector<256x64xf32>
    %c0_11 = arith.constant 0 : index
    %c0_12 = arith.constant 0 : index
    %14 = vector.load %arg6[%c0_11, %c0_12] : memref<64x16xf32, #tpu.memory_space<vmem>>, vector<64x16xf32>
    %cst_13 = arith.constant dense<0.000000e+00> : vector<256x16xf32>
    %15 = tpu.matmul %13, %14, %cst_13 {dimension_numbers = #tpu.dot_dimension_numbers<[1], [0], [0], [1], [0, 0, 1, 1], [], []>} : vector<256x64xf32>, vector<64x16xf32>, vector<256x16xf32> -> vector<256x16xf32>
    %c0_14 = arith.constant 0 : index
    %c0_15 = arith.constant 0 : index
    %16 = vector.load %arg7[%c0_14, %c0_15] : memref<1x16xf32, #tpu.memory_space<vmem>>, vector<1x16xf32>
    %17 = vector.broadcast %16 : vector<1x16xf32> to vector<256x16xf32>
    %18 = arith.addf %15, %17 : vector<256x16xf32>
    %19 = vector.shape_cast %18 : vector<256x16xf32> to vector<8x32x16xf32>
    %cst_16 = arith.constant dense<0.000000e+00> : vector<32x16xf32>
    %20 = vector.multi_reduction <add>, %19, %cst_16 [0] : vector<8x32x16xf32> to vector<32x16xf32>
    %cst_17 = arith.constant 1.250000e-01 : f32
    %21 = vector.broadcast %cst_17 : f32 to vector<32x16xf32>
    %22 = arith.mulf %20, %21 : vector<32x16xf32>
    %c0_18 = arith.constant 0 : index
    %c0_19 = arith.constant 0 : index
    %23 = vector.load %arg11[%c0_18, %c0_19] : memref<16x32xf32, #tpu.memory_space<vmem>>, vector<16x32xf32>
    %cst_20 = arith.constant dense<0.000000e+00> : vector<32x32xf32>
    %24 = tpu.matmul %22, %23, %cst_20 {dimension_numbers = #tpu.dot_dimension_numbers<[1], [0], [0], [1], [0, 0, 1, 1], [], []>} : vector<32x16xf32>, vector<16x32xf32>, vector<32x32xf32> -> vector<32x32xf32>
    %c0_21 = arith.constant 0 : index
    %c0_22 = arith.constant 0 : index
    %25 = vector.load %arg12[%c0_21, %c0_22] : memref<1x32xf32, #tpu.memory_space<vmem>>, vector<1x32xf32>
    %26 = vector.broadcast %25 : vector<1x32xf32> to vector<32x32xf32>
    %27 = arith.addf %24, %26 : vector<32x32xf32>
    %28 = math.tanh %27 : vector<32x32xf32>
    %c0_23 = arith.constant 0 : index
    %c0_24 = arith.constant 0 : index
    %29 = vector.load %arg13[%c0_23, %c0_24] : memref<32x32xf32, #tpu.memory_space<vmem>>, vector<32x32xf32>
    %cst_25 = arith.constant dense<0.000000e+00> : vector<32x32xf32>
    %30 = tpu.matmul %28, %29, %cst_25 {dimension_numbers = #tpu.dot_dimension_numbers<[1], [0], [0], [1], [0, 0, 1, 1], [], []>} : vector<32x32xf32>, vector<32x32xf32>, vector<32x32xf32> -> vector<32x32xf32>
    %c0_26 = arith.constant 0 : index
    %c0_27 = arith.constant 0 : index
    %31 = vector.load %arg14[%c0_26, %c0_27] : memref<1x32xf32, #tpu.memory_space<vmem>>, vector<1x32xf32>
    %32 = vector.broadcast %31 : vector<1x32xf32> to vector<32x32xf32>
    %33 = arith.addf %30, %32 : vector<32x32xf32>
    %34 = math.tanh %33 : vector<32x32xf32>
    %c0_28 = arith.constant 0 : index
    %c0_29 = arith.constant 0 : index
    %35 = vector.load %arg17[%c0_28, %c0_29] : memref<1x32xf32, #tpu.memory_space<vmem>>, vector<1x32xf32>
    %36 = vector.broadcast %35 : vector<1x32xf32> to vector<32x32xf32>
    %37 = arith.mulf %34, %36 : vector<32x32xf32>
    %cst_30 = arith.constant dense<0.000000e+00> : vector<32xf32>
    %38 = vector.multi_reduction <add>, %37, %cst_30 [1] : vector<32x32xf32> to vector<32xf32>
    %39 = vector.shape_cast %38 : vector<32xf32> to vector<32x1xf32>
    %c0_31 = arith.constant 0 : index
    %c0_32 = arith.constant 0 : index
    %40 = vector.load %arg18[%c0_31, %c0_32] : memref<1x1xf32, #tpu.memory_space<vmem>>, vector<1x1xf32>
    %41 = vector.broadcast %40 : vector<1x1xf32> to vector<32x1xf32>
    %42 = arith.addf %39, %41 : vector<32x1xf32>
    %c0_33 = arith.constant 0 : index
    %c0_34 = arith.constant 0 : index
    %43 = vector.load %arg19[%c0_33, %c0_34] : memref<32x1xf32, #tpu.memory_space<vmem>>, vector<32x1xf32>
    tpu.vector_store %arg19[%c0_33, %c0_34], %42 {strides = array<i32>} : memref<32x1xf32, #tpu.memory_space<vmem>>, vector<32x1xf32>,
    %44 = arith.mulf %34, %34 : vector<32x32xf32>
    %cst_35 = arith.constant 1.000000e+00 : f32
    %45 = vector.broadcast %cst_35 : f32 to vector<32x32xf32>
    %46 = arith.subf %45, %44 : vector<32x32xf32>
    %c0_36 = arith.constant 0 : index
    %c0_37 = arith.constant 0 : index
    %47 = vector.load %arg17[%c0_36, %c0_37] : memref<1x32xf32, #tpu.memory_space<vmem>>, vector<1x32xf32>
    %48 = vector.broadcast %47 : vector<1x32xf32> to vector<32x32xf32>
    %49 = arith.mulf %46, %48 : vector<32x32xf32>
    %c0_38 = arith.constant 0 : index
    %c0_39 = arith.constant 0 : index
    %50 = vector.load %arg16[%c0_38, %c0_39] : memref<32x32xf32, #tpu.memory_space<vmem>>, vector<32x32xf32>
    %cst_40 = arith.constant dense<0.000000e+00> : vector<32x32xf32>
    %51 = tpu.matmul %49, %50, %cst_40 {dimension_numbers = #tpu.dot_dimension_numbers<[1], [0], [0], [1], [0, 0, 1, 1], [], []>} : vector<32x32xf32>, vector<32x32xf32>, vector<32x32xf32> -> vector<32x32xf32>
    %52 = arith.mulf %28, %28 : vector<32x32xf32>
    %cst_41 = arith.constant 1.000000e+00 : f32
    %53 = vector.broadcast %cst_41 : f32 to vector<32x32xf32>
    %54 = arith.subf %53, %52 : vector<32x32xf32>
    %55 = arith.mulf %51, %54 : vector<32x32xf32>
    %c0_42 = arith.constant 0 : index
    %c0_43 = arith.constant 0 : index
    %56 = vector.load %arg15[%c0_42, %c0_43] : memref<32x16xf32, #tpu.memory_space<vmem>>, vector<32x16xf32>
    %cst_44 = arith.constant dense<0.000000e+00> : vector<32x16xf32>
    %57 = tpu.matmul %55, %56, %cst_44 {dimension_numbers = #tpu.dot_dimension_numbers<[1], [0], [0], [1], [0, 0, 1, 1], [], []>} : vector<32x32xf32>, vector<32x16xf32>, vector<32x16xf32> -> vector<32x16xf32>
    %cst_45 = arith.constant 1.250000e-01 : f32
    %58 = vector.broadcast %cst_45 : f32 to vector<32x16xf32>
    %59 = arith.mulf %57, %58 : vector<32x16xf32>
    %c0_46 = arith.constant 0 : index
    %c0_47 = arith.constant 0 : index
    %60 = vector.load %arg10[%c0_46, %c0_47] : memref<16x64xf32, #tpu.memory_space<vmem>>, vector<16x64xf32>
    %cst_48 = arith.constant dense<0.000000e+00> : vector<32x64xf32>
    %61 = tpu.matmul %59, %60, %cst_48 {dimension_numbers = #tpu.dot_dimension_numbers<[1], [0], [0], [1], [0, 0, 1, 1], [], []>} : vector<32x16xf32>, vector<16x64xf32>, vector<32x64xf32> -> vector<32x64xf32>
    %62 = tpu.concatenate %61, %61, %61, %61, %61, %61, %61, %61 in 0 : vector<32x64xf32>, vector<32x64xf32>, vector<32x64xf32>, vector<32x64xf32>, vector<32x64xf32>, vector<32x64xf32>, vector<32x64xf32>, vector<32x64xf32> -> vector<256x64xf32>
    %63 = arith.mulf %13, %13 : vector<256x64xf32>
    %cst_49 = arith.constant 1.000000e+00 : f32
    %64 = vector.broadcast %cst_49 : f32 to vector<256x64xf32>
    %65 = arith.subf %64, %63 : vector<256x64xf32>
    %66 = arith.mulf %62, %65 : vector<256x64xf32>
    %c0_50 = arith.constant 0 : index
    %c0_51 = arith.constant 0 : index
    %67 = vector.load %arg9[%c0_50, %c0_51] : memref<64x64xf32, #tpu.memory_space<vmem>>, vector<64x64xf32>
    %cst_52 = arith.constant dense<0.000000e+00> : vector<256x64xf32>
    %68 = tpu.matmul %66, %67, %cst_52 {dimension_numbers = #tpu.dot_dimension_numbers<[1], [0], [0], [1], [0, 0, 1, 1], [], []>} : vector<256x64xf32>, vector<64x64xf32>, vector<256x64xf32> -> vector<256x64xf32>
    %69 = arith.mulf %7, %7 : vector<256x64xf32>
    %cst_53 = arith.constant 1.000000e+00 : f32
    %70 = vector.broadcast %cst_53 : f32 to vector<256x64xf32>
    %71 = arith.subf %70, %69 : vector<256x64xf32>
    %72 = arith.mulf %68, %71 : vector<256x64xf32>
    %c0_54 = arith.constant 0 : index
    %c0_55 = arith.constant 0 : index
    %73 = vector.load %arg8[%c0_54, %c0_55] : memref<64x32xf32, #tpu.memory_space<vmem>>, vector<64x32xf32>
    %cst_56 = arith.constant dense<0.000000e+00> : vector<256x32xf32>
    %74 = tpu.matmul %72, %73, %cst_56 {dimension_numbers = #tpu.dot_dimension_numbers<[1], [0], [0], [1], [0, 0, 1, 1], [], []>} : vector<256x64xf32>, vector<64x32xf32>, vector<256x32xf32> -> vector<256x32xf32>
    %75 = vector.shape_cast %74 : vector<256x32xf32> to vector<8x32x32xf32>
    %c0_57 = arith.constant 0 : index
    %c0_58 = arith.constant 0 : index
    %c0_59 = arith.constant 0 : index
    %76 = vector.load %arg20[%c0_57, %c0_58, %c0_59] : memref<8x32x32xf32, #tpu.memory_space<vmem>>, vector<8x32x32xf32>
    tpu.vector_store %arg20[%c0_57, %c0_58, %c0_59], %75 {strides = array<i32>} : memref<8x32x32xf32, #tpu.memory_space<vmem>>, vector<8x32x32xf32>,
    return
  }
  func.func @transform_0(%arg0: i32) -> (i32, i32, i32) {
    %c0_i32 = arith.constant 0 : i32
    %c0_i32_0 = arith.constant 0 : i32
    %c0_i32_1 = arith.constant 0 : i32
    return %c0_i32, %arg0, %c0_i32_0 : i32, i32, i32
  }
  func.func @transform_1(%arg0: i32) -> (i32, i32) {
    %c0_i32 = arith.constant 0 : i32
    %c0_i32_0 = arith.constant 0 : i32
    %c0_i32_1 = arith.constant 0 : i32
    return %c0_i32, %c0_i32_0 : i32, i32
  }
  func.func @transform_2(%arg0: i32) -> (i32, i32) {
    %c0_i32 = arith.constant 0 : i32
    %c0_i32_0 = arith.constant 0 : i32
    %c0_i32_1 = arith.constant 0 : i32
    return %c0_i32, %c0_i32_0 : i32, i32
  }
  func.func @transform_3(%arg0: i32) -> (i32, i32) {
    %c0_i32 = arith.constant 0 : i32
    %c0_i32_0 = arith.constant 0 : i32
    %c0_i32_1 = arith.constant 0 : i32
    return %c0_i32, %c0_i32_0 : i32, i32
  }
  func.func @transform_4(%arg0: i32) -> (i32, i32) {
    %c0_i32 = arith.constant 0 : i32
    %c0_i32_0 = arith.constant 0 : i32
    %c0_i32_1 = arith.constant 0 : i32
    return %c0_i32, %c0_i32_0 : i32, i32
  }
  func.func @transform_5(%arg0: i32) -> (i32, i32) {
    %c0_i32 = arith.constant 0 : i32
    %c0_i32_0 = arith.constant 0 : i32
    %c0_i32_1 = arith.constant 0 : i32
    return %c0_i32, %c0_i32_0 : i32, i32
  }
  func.func @transform_6(%arg0: i32) -> (i32, i32) {
    %c0_i32 = arith.constant 0 : i32
    %c0_i32_0 = arith.constant 0 : i32
    %c0_i32_1 = arith.constant 0 : i32
    return %c0_i32, %c0_i32_0 : i32, i32
  }
  func.func @transform_7(%arg0: i32) -> (i32, i32) {
    %c0_i32 = arith.constant 0 : i32
    %c0_i32_0 = arith.constant 0 : i32
    %c0_i32_1 = arith.constant 0 : i32
    return %c0_i32, %c0_i32_0 : i32, i32
  }
  func.func @transform_8(%arg0: i32) -> (i32, i32) {
    %c0_i32 = arith.constant 0 : i32
    %c0_i32_0 = arith.constant 0 : i32
    %c0_i32_1 = arith.constant 0 : i32
    return %c0_i32, %c0_i32_0 : i32, i32
  }
  func.func @transform_9(%arg0: i32) -> (i32, i32) {
    %c0_i32 = arith.constant 0 : i32
    %c0_i32_0 = arith.constant 0 : i32
    %c0_i32_1 = arith.constant 0 : i32
    return %c0_i32, %c0_i32_0 : i32, i32
  }
  func.func @transform_10(%arg0: i32) -> (i32, i32) {
    %c0_i32 = arith.constant 0 : i32
    %c0_i32_0 = arith.constant 0 : i32
    %c0_i32_1 = arith.constant 0 : i32
    return %c0_i32, %c0_i32_0 : i32, i32
  }
  func.func @transform_11(%arg0: i32) -> (i32, i32) {
    %c0_i32 = arith.constant 0 : i32
    %c0_i32_0 = arith.constant 0 : i32
    %c0_i32_1 = arith.constant 0 : i32
    return %c0_i32, %c0_i32_0 : i32, i32
  }
  func.func @transform_12(%arg0: i32) -> (i32, i32) {
    %c0_i32 = arith.constant 0 : i32
    %c0_i32_0 = arith.constant 0 : i32
    %c0_i32_1 = arith.constant 0 : i32
    return %c0_i32, %c0_i32_0 : i32, i32
  }
  func.func @transform_13(%arg0: i32) -> (i32, i32) {
    %c0_i32 = arith.constant 0 : i32
    %c0_i32_0 = arith.constant 0 : i32
    %c0_i32_1 = arith.constant 0 : i32
    return %c0_i32, %c0_i32_0 : i32, i32
  }
  func.func @transform_14(%arg0: i32) -> (i32, i32) {
    %c0_i32 = arith.constant 0 : i32
    %c0_i32_0 = arith.constant 0 : i32
    %c0_i32_1 = arith.constant 0 : i32
    return %c0_i32, %c0_i32_0 : i32, i32
  }
  func.func @transform_15(%arg0: i32) -> (i32, i32) {
    %c0_i32 = arith.constant 0 : i32
    %c0_i32_0 = arith.constant 0 : i32
    %c0_i32_1 = arith.constant 0 : i32
    return %c0_i32, %c0_i32_0 : i32, i32
  }
  func.func @transform_16(%arg0: i32) -> (i32, i32) {
    %c0_i32 = arith.constant 0 : i32
    %c0_i32_0 = arith.constant 0 : i32
    %c0_i32_1 = arith.constant 0 : i32
    return %c0_i32, %c0_i32_0 : i32, i32
  }
  func.func @transform_17(%arg0: i32) -> (i32, i32) {
    %c0_i32 = arith.constant 0 : i32
    %c0_i32_0 = arith.constant 0 : i32
    %c0_i32_1 = arith.constant 0 : i32
    return %c0_i32, %c0_i32_0 : i32, i32
  }
  func.func @transform_18(%arg0: i32) -> (i32, i32) {
    %c0_i32 = arith.constant 0 : i32
    %c0_i32_0 = arith.constant 0 : i32
    return %arg0, %c0_i32 : i32, i32
  }
  func.func @transform_19(%arg0: i32) -> (i32, i32, i32) {
    %c0_i32 = arith.constant 0 : i32
    %c0_i32_0 = arith.constant 0 : i32
    %c0_i32_1 = arith.constant 0 : i32
    return %c0_i32, %arg0, %c0_i32_0 : i32, i32, i32
  }
}

</mosaic_0001>

<llo_original>
// kernel: tpu_custom_call.1
$region0: #{tpu_custom_call.1}
  #allocation0 [shape = 'u32[]', space=smem, size = 0x4, offset = 0x4, fixed_abs, tag = 'smem constant byte address 0x4 - core index']
  #allocation1 [shape = 'u32[144,128]{1,0:T(1,128)}', space=vmem, size = 0x12000, scoped, tag = 'internal scratch']
  #allocation2 [shape = 'f32[1,1]{1,0:T(1,128)S(1)}', space=vmem, size = 0x200, scoped, tag = 'scoped memory for tpu_custom_call.1']
  %s0 = inlined_call_operand.hbm [shape: f32[8,32,32], index: 0, kind: input, shape index: {}]
  %s1 = inlined_call_operand.vmem [shape: f32[32,64], index: 1, kind: input, shape index: {}]
  %s2 = inlined_call_operand.vmem [shape: f32[1,64], index: 2, kind: input, shape index: {}]
  %s3 = inlined_call_operand.vmem [shape: f32[64,64], index: 3, kind: input, shape index: {}]
  %s4 = inlined_call_operand.hbm [shape: f32[1,64], index: 4, kind: input, shape index: {}]
  %s5 = inlined_call_operand.vmem [shape: f32[64,16], index: 5, kind: input, shape index: {}]
  %s6 = inlined_call_operand.hbm [shape: f32[1,16], index: 6, kind: input, shape index: {}]
  %s7 = inlined_call_operand.vmem [shape: f32[64,32], index: 7, kind: input, shape index: {}]
  %s8 = inlined_call_operand.vmem [shape: f32[64,64], index: 8, kind: input, shape index: {}]
  %s9 = inlined_call_operand.hbm [shape: f32[16,64], index: 9, kind: input, shape index: {}]
  %s10 = inlined_call_operand.hbm [shape: f32[16,32], index: 10, kind: input, shape index: {}]
  %s11 = inlined_call_operand.hbm [shape: f32[1,32], index: 11, kind: input, shape index: {}]
  %s12 = inlined_call_operand.vmem [shape: f32[32,32], index: 12, kind: input, shape index: {}]
  %s13 = inlined_call_operand.vmem [shape: f32[1,32], index: 13, kind: input, shape index: {}]
  %s14 = inlined_call_operand.vmem [shape: f32[32,16], index: 14, kind: input, shape index: {}]
  %s15 = inlined_call_operand.vmem [shape: f32[32,32], index: 15, kind: input, shape index: {}]
  %s16 = inlined_call_operand.vmem [shape: f32[1,32], index: 16, kind: input, shape index: {}]
  %s17 = inlined_call_operand.<no memory space> [shape: f32[1,1], index: 17, kind: input, shape index: {}]
  %s18 = inlined_call_operand.vmem [shape: f32[32,1], index: 18, kind: output, shape index: {0}]
  %s19 = inlined_call_operand.hbm [shape: f32[8,32,32], index: 19, kind: output, shape index: {1}]
  %20 = xla_tuple %s18, %s19
  %s21 = sld [smem:[#allocation0]]
  $region114: #{tpu_custom_call.1} parent=0
    _
  %s23 = ssub.s32 1, %s21
  %s24 = scalar_select 0, %s23, %s21
  %v25 = vstv %s17
  %26 = vst [vmem:[#allocation2] sm:$0x1] %v25
  $region1: #{tpu_custom_call.1} parent=0
    #allocation3 [shape = 'u8[131072]{0}', space=vmem, size = 0x20000, scoped, tag = 'input window, operand 0, single buffered']
    #allocation4 [shape = 's32[1]{0}', space=sflag, size = 0x4, scoped, tag = 'scoped memory for tpu_custom_call.1']
    #allocation5 [shape = 's32[1]{0}', space=sflag, size = 0x4, scoped, tag = 'scoped memory for tpu_custom_call.1']
    #allocation6 [shape = 'u8[512]{0}', space=vmem, size = 0x400, scoped, tag = 'input window, operand 4, single buffered']
    #allocation7 [shape = 's32[1]{0}', space=sflag, size = 0x4, scoped, tag = 'scoped memory for tpu_custom_call.1']
    #allocation8 [shape = 'u8[512]{0}', space=vmem, size = 0x400, scoped, tag = 'input window, operand 6, single buffered']
    #allocation9 [shape = 'u8[8192]{0}', space=vmem, size = 0x2000, scoped, tag = 'input window, operand 9, single buffered']
    #allocation10 [shape = 's32[1]{0}', space=sflag, size = 0x4, scoped, tag = 'scoped memory for tpu_custom_call.1']
    #allocation11 [shape = 'u8[8192]{0}', space=vmem, size = 0x2000, scoped, tag = 'input window, operand 10, single buffered']
    #allocation12 [shape = 'u8[512]{0}', space=vmem, size = 0x400, scoped, tag = 'input window, operand 11, single buffered']
    #allocation13 [shape = 's32[1]{0}', space=sflag, size = 0x4, scoped, tag = 'scoped memory for tpu_custom_call.1']
    #allocation14 [shape = 'u8[131072]{0}', space=vmem, size = 0x20000, scoped, tag = 'output window, operand 1, single buffered']
    %27 = vsyncpa [#allocation4], 0
    %28 = vsyncpa [#allocation7], 0
    %29 = vsyncpa [#allocation10], 0
    %30 = vsyncpa [#allocation13], 0
    %31 = vsyncpa [#allocation5], 0
    // Predicated region
    $region2: #{tpu_custom_call.1} parent=1 // pred_check
      _
    $region3: #{tpu_custom_call.1} parent=1 // pred_check_branch
      %33 = sbr.rel (0) target = $region5
    $region4: #{tpu_custom_call.1} parent=1 // pred_region
      %s35 = ssub.s32 4096, 4096
      %36 = vsyncadd [#allocation4], %s35
      %s37 = sshll.u32 [#allocation3], 4
      %s38 = int_to_ptr.vmem [resolvable:$true] %s37
      %43 = dma.hbm_to_vmem [thread:$0]  %s0, 4096, %s38, [#allocation4], 128, 128, 8
    $region5: #{tpu_custom_call.1} parent=1 // pred_fallthru
      _
    // Predicated region
    $region6: #{tpu_custom_call.1} parent=1 // pred_check
      _
    $region7: #{tpu_custom_call.1} parent=1 // pred_check_branch
      %45 = sbr.rel (0) target = $region9
    $region8: #{tpu_custom_call.1} parent=1 // pred_region
      _
    $region9: #{tpu_custom_call.1} parent=1 // pred_fallthru
      _
    // Predicated region
    $region10: #{tpu_custom_call.1} parent=1 // pred_check
      _
    $region11: #{tpu_custom_call.1} parent=1 // pred_check_branch
      %47 = sbr.rel (0) target = $region13
    $region12: #{tpu_custom_call.1} parent=1 // pred_region
      _
    $region13: #{tpu_custom_call.1} parent=1 // pred_fallthru
      _
    // Predicated region
    $region14: #{tpu_custom_call.1} parent=1 // pred_check
      _
    $region15: #{tpu_custom_call.1} parent=1 // pred_check_branch
      %49 = sbr.rel (0) target = $region17
    $region16: #{tpu_custom_call.1} parent=1 // pred_region
      _
    $region17: #{tpu_custom_call.1} parent=1 // pred_fallthru
      _
    // Predicated region
    $region18: #{tpu_custom_call.1} parent=1 // pred_check
      _
    $region19: #{tpu_custom_call.1} parent=1 // pred_check_branch
      %51 = sbr.rel (0) target = $region21
    $region20: #{tpu_custom_call.1} parent=1 // pred_region
      %s53 = ssub.s32 16, 16
      %54 = vsyncadd [#allocation7], %s53
      %s56 = sshll.u32 [#allocation6], 4
      %s57 = int_to_ptr.vmem [resolvable:$true] %s56
      %59 = dma.hbm_to_vmem [thread:$0]  %s4, 16, %s57, [#allocation7]
    $region21: #{tpu_custom_call.1} parent=1 // pred_fallthru
      _
    // Predicated region
    $region22: #{tpu_custom_call.1} parent=1 // pred_check
      _
    $region23: #{tpu_custom_call.1} parent=1 // pred_check_branch
      %61 = sbr.rel (0) target = $region25
    $region24: #{tpu_custom_call.1} parent=1 // pred_region
      _
    $region25: #{tpu_custom_call.1} parent=1 // pred_fallthru
      _
    // Predicated region
    $region26: #{tpu_custom_call.1} parent=1 // pred_check
      _
    $region27: #{tpu_custom_call.1} parent=1 // pred_check_branch
      %63 = sbr.rel (0) target = $region29
    $region28: #{tpu_custom_call.1} parent=1 // pred_region
      %s65 = ssub.s32 16, 16
      %66 = vsyncadd [#allocation7], %s65
      %s68 = sshll.u32 [#allocation8], 4
      %s69 = int_to_ptr.vmem [resolvable:$true] %s68
      %71 = dma.hbm_to_vmem [thread:$0]  %s6, 16, %s69, [#allocation7]
    $region29: #{tpu_custom_call.1} parent=1 // pred_fallthru
      _
    // Predicated region
    $region30: #{tpu_custom_call.1} parent=1 // pred_check
      _
    $region31: #{tpu_custom_call.1} parent=1 // pred_check_branch
      %73 = sbr.rel (0) target = $region33
    $region32: #{tpu_custom_call.1} parent=1 // pred_region
      _
    $region33: #{tpu_custom_call.1} parent=1 // pred_fallthru
      _
    // Predicated region
    $region34: #{tpu_custom_call.1} parent=1 // pred_check
      _
    $region35: #{tpu_custom_call.1} parent=1 // pred_check_branch
      %75 = sbr.rel (0) target = $region37
    $region36: #{tpu_custom_call.1} parent=1 // pred_region
      _
    $region37: #{tpu_custom_call.1} parent=1 // pred_fallthru
      _
    // Predicated region
    $region38: #{tpu_custom_call.1} parent=1 // pred_check
      _
    $region39: #{tpu_custom_call.1} parent=1 // pred_check_branch
      %77 = sbr.rel (0) target = $region41
    $region40: #{tpu_custom_call.1} parent=1 // pred_region
      %s79 = ssub.s32 256, 256
      %80 = vsyncadd [#allocation10], %s79
      %s81 = sshll.u32 [#allocation9], 4
      %s82 = int_to_ptr.vmem [resolvable:$true] %s81
      %87 = dma.hbm_to_vmem [thread:$0]  %s9, 256, %s82, [#allocation10], 128, 128, 8
    $region41: #{tpu_custom_call.1} parent=1 // pred_fallthru
      _
    // Predicated region
    $region42: #{tpu_custom_call.1} parent=1 // pred_check
      _
    $region43: #{tpu_custom_call.1} parent=1 // pred_check_branch
      %89 = sbr.rel (0) target = $region45
    $region44: #{tpu_custom_call.1} parent=1 // pred_region
      %s91 = ssub.s32 256, 256
      %92 = vsyncadd [#allocation10], %s91
      %s93 = sshll.u32 [#allocation11], 4
      %s94 = int_to_ptr.vmem [resolvable:$true] %s93
      %99 = dma.hbm_to_vmem [thread:$0]  %s10, 256, %s94, [#allocation10], 128, 128, 8
    $region45: #{tpu_custom_call.1} parent=1 // pred_fallthru
      _
    // Predicated region
    $region46: #{tpu_custom_call.1} parent=1 // pred_check
      _
    $region47: #{tpu_custom_call.1} parent=1 // pred_check_branch
      %101 = sbr.rel (0) target = $region49
    $region48: #{tpu_custom_call.1} parent=1 // pred_region
      %s103 = ssub.s32 16, 16
      %104 = vsyncadd [#allocation13], %s103
      %s106 = sshll.u32 [#allocation12], 4
      %s107 = int_to_ptr.vmem [resolvable:$true] %s106
      %109 = dma.hbm_to_vmem [thread:$0]  %s11, 16, %s107, [#allocation13]
    $region49: #{tpu_custom_call.1} parent=1 // pred_fallthru
      _
    // Predicated region
    $region50: #{tpu_custom_call.1} parent=1 // pred_check
      _
    $region51: #{tpu_custom_call.1} parent=1 // pred_check_branch
      %111 = sbr.rel (0) target = $region53
    $region52: #{tpu_custom_call.1} parent=1 // pred_region
      _
    $region53: #{tpu_custom_call.1} parent=1 // pred_fallthru
      _
    // Predicated region
    $region54: #{tpu_custom_call.1} parent=1 // pred_check
      _
    $region55: #{tpu_custom_call.1} parent=1 // pred_check_branch
      %113 = sbr.rel (0) target = $region57
    $region56: #{tpu_custom_call.1} parent=1 // pred_region
      _
    $region57: #{tpu_custom_call.1} parent=1 // pred_fallthru
      _
    // Predicated region
    $region58: #{tpu_custom_call.1} parent=1 // pred_check
      _
    $region59: #{tpu_custom_call.1} parent=1 // pred_check_branch
      %115 = sbr.rel (0) target = $region61
    $region60: #{tpu_custom_call.1} parent=1 // pred_region
      _
    $region61: #{tpu_custom_call.1} parent=1 // pred_fallthru
      _
    // Predicated region
    $region62: #{tpu_custom_call.1} parent=1 // pred_check
      _
    $region63: #{tpu_custom_call.1} parent=1 // pred_check_branch
      %117 = sbr.rel (0) target = $region65
    $region64: #{tpu_custom_call.1} parent=1 // pred_region
      _
    $region65: #{tpu_custom_call.1} parent=1 // pred_fallthru
      _
    // Predicated region
    $region66: #{tpu_custom_call.1} parent=1 // pred_check
      _
    $region67: #{tpu_custom_call.1} parent=1 // pred_check_branch
      %119 = sbr.rel (0) target = $region69
    $region68: #{tpu_custom_call.1} parent=1 // pred_region
      _
    $region69: #{tpu_custom_call.1} parent=1 // pred_fallthru
      _
    // Predicated region
    $region70: #{tpu_custom_call.1} parent=1 // pred_check
      _
    $region71: #{tpu_custom_call.1} parent=1 // pred_check_branch
      %121 = sbr.rel (0) target = $region73
    $region72: #{tpu_custom_call.1} parent=1 // pred_region
      _
    $region73: #{tpu_custom_call.1} parent=1 // pred_fallthru
      _
    // Predicated region
    $region74: #{tpu_custom_call.1} parent=1 // pred_check
      _
    $region75: #{tpu_custom_call.1} parent=1 // pred_check_branch
      %123 = sbr.rel (0) target = $region77
    $region76: #{tpu_custom_call.1} parent=1 // pred_region
      %124 = dma.done [#allocation4], 4096
    $region77: #{tpu_custom_call.1} parent=1 // pred_fallthru
      _
    // Predicated region
    $region78: #{tpu_custom_call.1} parent=1 // pred_check
      _
    $region79: #{tpu_custom_call.1} parent=1 // pred_check_branch
      %126 = sbr.rel (0) target = $region81
    $region80: #{tpu_custom_call.1} parent=1 // pred_region
      %127 = dma.done [#allocation7], 16
    $region81: #{tpu_custom_call.1} parent=1 // pred_fallthru
      _
    // Predicated region
    $region82: #{tpu_custom_call.1} parent=1 // pred_check
      _
    $region83: #{tpu_custom_call.1} parent=1 // pred_check_branch
      %129 = sbr.rel (0) target = $region85
    $region84: #{tpu_custom_call.1} parent=1 // pred_region
      %130 = dma.done [#allocation7], 16
    $region85: #{tpu_custom_call.1} parent=1 // pred_fallthru
      _
    // Predicated region
    $region86: #{tpu_custom_call.1} parent=1 // pred_check
      _
    $region87: #{tpu_custom_call.1} parent=1 // pred_check_branch
      %132 = sbr.rel (0) target = $region89
    $region88: #{tpu_custom_call.1} parent=1 // pred_region
      %133 = dma.done [#allocation10], 256
    $region89: #{tpu_custom_call.1} parent=1 // pred_fallthru
      _
    // Predicated region
    $region90: #{tpu_custom_call.1} parent=1 // pred_check
      _
    $region91: #{tpu_custom_call.1} parent=1 // pred_check_branch
      %135 = sbr.rel (0) target = $region93
    $region92: #{tpu_custom_call.1} parent=1 // pred_region
      %136 = dma.done [#allocation10], 256
    $region93: #{tpu_custom_call.1} parent=1 // pred_fallthru
      _
    // Predicated region
    $region94: #{tpu_custom_call.1} parent=1 // pred_check
      _
    $region95: #{tpu_custom_call.1} parent=1 // pred_check_branch
      %138 = sbr.rel (0) target = $region97
    $region96: #{tpu_custom_call.1} parent=1 // pred_region
      %139 = dma.done [#allocation13], 16
    $region97: #{tpu_custom_call.1} parent=1 // pred_fallthru
      _
    %v140 = vld [vmem:[#allocation3] sm:$0xff]
    %v141 = vld [vmem:[#allocation3 + $0x8] sm:$0xff]
    %v142 = vld [vmem:[#allocation3 + $0x10] sm:$0xff]
    %v143 = vld [vmem:[#allocation3 + $0x18] sm:$0xff]
    %v144 = vld [vmem:[#allocation3 + $0x20] sm:$0xff]
    %v145 = vld [vmem:[#allocation3 + $0x28] sm:$0xff]
    %v146 = vld [vmem:[#allocation3 + $0x30] sm:$0xff]
    %v147 = vld [vmem:[#allocation3 + $0x38] sm:$0xff]
    %v148 = vld [vmem:[#allocation3 + $0x40] sm:$0xff]
    %v149 = vld [vmem:[#allocation3 + $0x48] sm:$0xff]
    %v150 = vld [vmem:[#allocation3 + $0x50] sm:$0xff]
    %v151 = vld [vmem:[#allocation3 + $0x58] sm:$0xff]
    %v152 = vld [vmem:[#allocation3 + $0x60] sm:$0xff]
    %v153 = vld [vmem:[#allocation3 + $0x68] sm:$0xff]
    %v154 = vld [vmem:[#allocation3 + $0x70] sm:$0xff]
    %v155 = vld [vmem:[#allocation3 + $0x78] sm:$0xff]
    %v156 = vld [vmem:[#allocation3 + $0x80] sm:$0xff]
    %v157 = vld [vmem:[#allocation3 + $0x88] sm:$0xff]
    %v158 = vld [vmem:[#allocation3 + $0x90] sm:$0xff]
    %v159 = vld [vmem:[#allocation3 + $0x98] sm:$0xff]
    %v160 = vld [vmem:[#allocation3 + $0xa0] sm:$0xff]
    %v161 = vld [vmem:[#allocation3 + $0xa8] sm:$0xff]
    %v162 = vld [vmem:[#allocation3 + $0xb0] sm:$0xff]
    %v163 = vld [vmem:[#allocation3 + $0xb8] sm:$0xff]
    %v164 = vld [vmem:[#allocation3 + $0xc0] sm:$0xff]
    %v165 = vld [vmem:[#allocation3 + $0xc8] sm:$0xff]
    %v166 = vld [vmem:[#allocation3 + $0xd0] sm:$0xff]
    %v167 = vld [vmem:[#allocation3 + $0xd8] sm:$0xff]
    %v168 = vld [vmem:[#allocation3 + $0xe0] sm:$0xff]
    %v169 = vld [vmem:[#allocation3 + $0xe8] sm:$0xff]
    %v170 = vld [vmem:[#allocation3 + $0xf0] sm:$0xff]
    %v171 = vld [vmem:[#allocation3 + $0xf8] sm:$0xff]
    %v172 = vld [vmem:[%s1] sm:$0xff]
    %v173 = vld [vmem:[%s1 + $0x8] sm:$0xff]
    %v174 = vld [vmem:[%s1 + $0x10] sm:$0xff]
    %v175 = vld [vmem:[%s1 + $0x18] sm:$0xff]
    %v176 = vld [vmem:[%s2] sm:$0x1]
    %v178 = vlaneseq
    %v179 = vshrl.u32 %v178, 7
    %v180 = vsub.s32 0, %v179
    %v181 = vrot.slane %v176, %v180
    %vm183 = vcmask 261120
    %v185 = vsel %vm183, %v140, 0
    %v188 = vsel %vm183, %v141, 0
    %v191 = vsel %vm183, %v142, 0
    %v194 = vsel %vm183, %v143, 0
    %v197 = vsel %vm183, %v144, 0
    %v200 = vsel %vm183, %v145, 0
    %v203 = vsel %vm183, %v146, 0
    %v206 = vsel %vm183, %v147, 0
    %v209 = vsel %vm183, %v148, 0
    %v212 = vsel %vm183, %v149, 0
    %v215 = vsel %vm183, %v150, 0
    %v218 = vsel %vm183, %v151, 0
    %v221 = vsel %vm183, %v152, 0
    %v224 = vsel %vm183, %v153, 0
    %v227 = vsel %vm183, %v154, 0
    %v230 = vsel %vm183, %v155, 0
    %v233 = vsel %vm183, %v156, 0
    %v236 = vsel %vm183, %v157, 0
    %v239 = vsel %vm183, %v158, 0
    %v242 = vsel %vm183, %v159, 0
    %v245 = vsel %vm183, %v160, 0
    %v248 = vsel %vm183, %v161, 0
    %v251 = vsel %vm183, %v162, 0
    %v254 = vsel %vm183, %v163, 0
    %v257 = vsel %vm183, %v164, 0
    %v260 = vsel %vm183, %v165, 0
    %v263 = vsel %vm183, %v166, 0
    %v266 = vsel %vm183, %v167, 0
    %v269 = vsel %vm183, %v168, 0
    %v272 = vsel %vm183, %v169, 0
    %v275 = vsel %vm183, %v170, 0
    %v278 = vsel %vm183, %v171, 0
    %280 = vmatprep.subr.mxu0 0.0
    %281 = vmatpush1.msra.mxu0 %v172
    %282 = vmatprep.subr.mxu0 0.0
    %283 = vmatpush1.msra.mxu0 %v173
    %284 = vmatprep.subr.mxu0 0.0
    %285 = vmatpush1.msra.mxu0 %v174
    %286 = vmatprep.subr.mxu0 0.0
    %287 = vmatpush1.msra.mxu0 %v175
    %288 = vmatprep.subr.mxu0 0.0
    %289 = vmatpush1.msra.mxu0 0.0
    %290 = vmatprep.subr.mxu0 0.0
    %291 = vmatpush1.msra.mxu0 0.0
    %292 = vmatprep.subr.mxu0 0.0
    %293 = vmatpush1.msra.mxu0 0.0
    %294 = vmatprep.subr.mxu0 0.0
    %295 = vmatpush1.msra.mxu0 0.0
    %296 = vmatprep.subr.mxu0 0.0
    %297 = vmatpush1.msra.mxu0 0.0
    %298 = vmatprep.subr.mxu0 0.0
    %299 = vmatpush1.msra.mxu0 0.0
    %300 = vmatprep.subr.mxu0 0.0
    %301 = vmatpush1.msra.mxu0 0.0
    %302 = vmatprep.subr.mxu0 0.0
    %303 = vmatpush1.msra.mxu0 0.0
    %304 = vmatprep.subr.mxu0 0.0
    %305 = vmatpush1.msra.mxu0 0.0
    %306 = vmatprep.subr.mxu0 0.0
    %307 = vmatpush1.msra.mxu0 0.0
    %308 = vmatprep.subr.mxu0 0.0
    %309 = vmatpush1.msra.mxu0 0.0
    %310 = vmatprep.subr.mxu0 0.0
    %311 = vmatpush1.msra.mxu0 0.0
    %312 = vmatprep.subr.mxu0 0.0
    %313 = vmatpush1.msra.mxu0 0.0
    %314 = vmatprep.subr.mxu0 0.0
    %315 = vmatpush1.msra.mxu0 0.0
    %316 = vmatprep.subr.mxu0 0.0
    %317 = vmatpush1.msra.mxu0 0.0
    %318 = vmatprep.subr.mxu0 0.0
    %319 = vmatpush1.msra.mxu0 0.0
    %320 = vmatprep.subr.mxu0 0.0
    %321 = vmatpush1.msra.mxu0 0.0
    %322 = vmatprep.subr.mxu0 0.0
    %323 = vmatpush1.msra.mxu0 0.0
    %324 = vmatprep.subr.mxu0 0.0
    %325 = vmatpush1.msra.mxu0 0.0
    %326 = vmatprep.subr.mxu0 0.0
    %327 = vmatpush1.msra.mxu0 0.0
    %328 = vmatprep.subr.mxu0 0.0
    %329 = vmatpush1.msra.mxu0 0.0
    %330 = vmatprep.subr.mxu0 0.0
    %331 = vmatpush1.msra.mxu0 0.0
    %332 = vmatprep.subr.mxu0 0.0
    %333 = vmatpush1.msra.mxu0 0.0
    %334 = vmatprep.subr.mxu0 0.0
    %335 = vmatpush1.msra.mxu0 0.0
    %336 = vmatprep.subr.mxu0 0.0
    %337 = vmatpush1.msra.mxu0 0.0
    %338 = vmatprep.subr.mxu0 0.0
    %339 = vmatpush1.msra.mxu0 0.0
    %340 = vmatprep.subr.mxu0 0.0
    %341 = vmatpush1.msra.mxu0 0.0
    %342 = vmatprep.subr.mxu0 0.0
    %343 = vmatpush1.msra.mxu0 0.0
    %344 = vmatprep.mubr.f32.mxu0 0.0
    %345 = vmatmul.mubr.f32.gmra.mrb[0].mxu0 %v185
    %v346 = vpop.f32.mrb[0].mxu0
    %v347 = vadd.f32 %v181, %v346
    %v348 = vpop.f32.mrb[0].mxu0
    %349 = vmatprep.mubr.f32.mxu0 0.0
    %350 = vmatmul.mubr.f32.gmra.mrb[0].mxu0 %v188
    %v351 = vpop.f32.mrb[0].mxu0
    %v352 = vadd.f32 %v181, %v351
    %v353 = vpop.f32.mrb[0].mxu0
    %354 = vmatprep.mubr.f32.mxu0 0.0
    %355 = vmatmul.mubr.f32.gmra.mrb[0].mxu0 %v191
    %v356 = vpop.f32.mrb[0].mxu0
    %v357 = vadd.f32 %v181, %v356
    %v358 = vpop.f32.mrb[0].mxu0
    %359 = vmatprep.mubr.f32.mxu0 0.0
    %360 = vmatmul.mubr.f32.gmra.mrb[0].mxu0 %v194
    %v361 = vpop.f32.mrb[0].mxu0
    %v362 = vadd.f32 %v181, %v361
    %v363 = vpop.f32.mrb[0].mxu0
    %364 = vmatprep.mubr.f32.mxu0 0.0
    %365 = vmatmul.mubr.f32.gmra.mrb[0].mxu0 %v197
    %v366 = vpop.f32.mrb[0].mxu0
    %v367 = vadd.f32 %v181, %v366
    %v368 = vpop.f32.mrb[0].mxu0
    %369 = vmatprep.mubr.f32.mxu0 0.0
    %370 = vmatmul.mubr.f32.gmra.mrb[0].mxu0 %v200
    %v371 = vpop.f32.mrb[0].mxu0
    %v372 = vadd.f32 %v181, %v371
    %v373 = vpop.f32.mrb[0].mxu0
    %374 = vmatprep.mubr.f32.mxu0 0.0
    %375 = vmatmul.mubr.f32.gmra.mrb[0].mxu0 %v203
    %v376 = vpop.f32.mrb[0].mxu0
    %v377 = vadd.f32 %v181, %v376
    %v378 = vpop.f32.mrb[0].mxu0
    %379 = vmatprep.mubr.f32.mxu0 0.0
    %380 = vmatmul.mubr.f32.gmra.mrb[0].mxu0 %v206
    %v381 = vpop.f32.mrb[0].mxu0
    %v382 = vadd.f32 %v181, %v381
    %v383 = vpop.f32.mrb[0].mxu0
    %384 = vmatprep.mubr.f32.mxu0 0.0
    %385 = vmatmul.mubr.f32.gmra.mrb[0].mxu0 %v209
    %v386 = vpop.f32.mrb[0].mxu0
    %v387 = vadd.f32 %v181, %v386
    %v388 = vpop.f32.mrb[0].mxu0
    %389 = vmatprep.mubr.f32.mxu0 0.0
    %390 = vmatmul.mubr.f32.gmra.mrb[0].mxu0 %v212
    %v391 = vpop.f32.mrb[0].mxu0
    %v392 = vadd.f32 %v181, %v391
    %v393 = vpop.f32.mrb[0].mxu0
    %394 = vmatprep.mubr.f32.mxu0 0.0
    %395 = vmatmul.mubr.f32.gmra.mrb[0].mxu0 %v215
    %v396 = vpop.f32.mrb[0].mxu0
    %v397 = vadd.f32 %v181, %v396
    %v398 = vpop.f32.mrb[0].mxu0
    %399 = vmatprep.mubr.f32.mxu0 0.0
    %400 = vmatmul.mubr.f32.gmra.mrb[0].mxu0 %v218
    %v401 = vpop.f32.mrb[0].mxu0
    %v402 = vadd.f32 %v181, %v401
    %v403 = vpop.f32.mrb[0].mxu0
    %404 = vmatprep.mubr.f32.mxu0 0.0
    %405 = vmatmul.mubr.f32.gmra.mrb[0].mxu0 %v221
    %v406 = vpop.f32.mrb[0].mxu0
    %v407 = vadd.f32 %v181, %v406
    %v408 = vpop.f32.mrb[0].mxu0
    %409 = vmatprep.mubr.f32.mxu0 0.0
    %410 = vmatmul.mubr.f32.gmra.mrb[0].mxu0 %v224
    %v411 = vpop.f32.mrb[0].mxu0
    %v412 = vadd.f32 %v181, %v411
    %v413 = vpop.f32.mrb[0].mxu0
    %414 = vmatprep.mubr.f32.mxu0 0.0
    %415 = vmatmul.mubr.f32.gmra.mrb[0].mxu0 %v227
    %v416 = vpop.f32.mrb[0].mxu0
    %v417 = vadd.f32 %v181, %v416
    %v418 = vpop.f32.mrb[0].mxu0
    %419 = vmatprep.mubr.f32.mxu0 0.0
    %420 = vmatmul.mubr.f32.gmra.mrb[0].mxu0 %v230
    %v421 = vpop.f32.mrb[0].mxu0
    %v422 = vadd.f32 %v181, %v421
    %v423 = vpop.f32.mrb[0].mxu0
    %424 = vmatprep.mubr.f32.mxu0 0.0
    %425 = vmatmul.mubr.f32.gmra.mrb[0].mxu0 %v233
    %v426 = vpop.f32.mrb[0].mxu0
    %v427 = vadd.f32 %v181, %v426
    %v428 = vpop.f32.mrb[0].mxu0
    %429 = vmatprep.mubr.f32.mxu0 0.0
    %430 = vmatmul.mubr.f32.gmra.mrb[0].mxu0 %v236
    %v431 = vpop.f32.mrb[0].mxu0
    %v432 = vadd.f32 %v181, %v431
    %v433 = vpop.f32.mrb[0].mxu0
    %434 = vmatprep.mubr.f32.mxu0 0.0
    %435 = vmatmul.mubr.f32.gmra.mrb[0].mxu0 %v239
    %v436 = vpop.f32.mrb[0].mxu0
    %v437 = vadd.f32 %v181, %v436
    %v438 = vpop.f32.mrb[0].mxu0
    %439 = vmatprep.mubr.f32.mxu0 0.0
    %440 = vmatmul.mubr.f32.gmra.mrb[0].mxu0 %v242
    %v441 = vpop.f32.mrb[0].mxu0
    %v442 = vadd.f32 %v181, %v441
    %v443 = vpop.f32.mrb[0].mxu0
    %444 = vmatprep.mubr.f32.mxu0 0.0
    %445 = vmatmul.mubr.f32.gmra.mrb[0].mxu0 %v245
    %v446 = vpop.f32.mrb[0].mxu0
    %v447 = vadd.f32 %v181, %v446
    %v448 = vpop.f32.mrb[0].mxu0
    %449 = vmatprep.mubr.f32.mxu0 0.0
    %450 = vmatmul.mubr.f32.gmra.mrb[0].mxu0 %v248
    %v451 = vpop.f32.mrb[0].mxu0
    %v452 = vadd.f32 %v181, %v451
    %v453 = vpop.f32.mrb[0].mxu0
    %454 = vmatprep.mubr.f32.mxu0 0.0
    %455 = vmatmul.mubr.f32.gmra.mrb[0].mxu0 %v251
    %v456 = vpop.f32.mrb[0].mxu0
    %v457 = vadd.f32 %v181, %v456
    %v458 = vpop.f32.mrb[0].mxu0
    %459 = vmatprep.mubr.f32.mxu0 0.0
    %460 = vmatmul.mubr.f32.gmra.mrb[0].mxu0 %v254
    %v461 = vpop.f32.mrb[0].mxu0
    %v462 = vadd.f32 %v181, %v461
    %v463 = vpop.f32.mrb[0].mxu0
    %464 = vmatprep.mubr.f32.mxu0 0.0
    %465 = vmatmul.mubr.f32.gmra.mrb[0].mxu0 %v257
    %v466 = vpop.f32.mrb[0].mxu0
    %v467 = vadd.f32 %v181, %v466
    %v468 = vpop.f32.mrb[0].mxu0
    %469 = vmatprep.mubr.f32.mxu0 0.0
    %470 = vmatmul.mubr.f32.gmra.mrb[0].mxu0 %v260
    %v471 = vpop.f32.mrb[0].mxu0
    %v472 = vadd.f32 %v181, %v471
    %v473 = vpop.f32.mrb[0].mxu0
    %474 = vmatprep.mubr.f32.mxu0 0.0
    %475 = vmatmul.mubr.f32.gmra.mrb[0].mxu0 %v263
    %v476 = vpop.f32.mrb[0].mxu0
    %v477 = vadd.f32 %v181, %v476
    %v478 = vpop.f32.mrb[0].mxu0
    %479 = vmatprep.mubr.f32.mxu0 0.0
    %480 = vmatmul.mubr.f32.gmra.mrb[0].mxu0 %v266
    %v481 = vpop.f32.mrb[0].mxu0
    %v482 = vadd.f32 %v181, %v481
    %v483 = vpop.f32.mrb[0].mxu0
    %484 = vmatprep.mubr.f32.mxu0 0.0
    %485 = vmatmul.mubr.f32.gmra.mrb[0].mxu0 %v269
    %v486 = vpop.f32.mrb[0].mxu0
    %v487 = vadd.f32 %v181, %v486
    %v488 = vpop.f32.mrb[0].mxu0
    %489 = vmatprep.mubr.f32.mxu0 0.0
    %490 = vmatmul.mubr.f32.gmra.mrb[0].mxu0 %v272
    %v491 = vpop.f32.mrb[0].mxu0
    %v492 = vadd.f32 %v181, %v491
    %v493 = vpop.f32.mrb[0].mxu0
    %494 = vmatprep.mubr.f32.mxu0 0.0
    %495 = vmatmul.mubr.f32.gmra.mrb[0].mxu0 %v275
    %v496 = vpop.f32.mrb[0].mxu0
    %v497 = vadd.f32 %v181, %v496
    %v498 = vpop.f32.mrb[0].mxu0
    %499 = vmatprep.mubr.f32.mxu0 0.0
    %500 = vmatmul.mubr.f32.gmra.mrb[0].mxu0 %v278
    %v501 = vpop.f32.mrb[0].mxu0
    %v502 = vadd.f32 %v181, %v501
    %v503 = vpop.f32.mrb[0].mxu0
    %504 = vdwg.mxu0
    %v505 = vtanh.pop %v347
    %v506 = vtanh.pop %v352
    %v507 = vtanh.pop %v357
    %v508 = vtanh.pop %v362
    %v509 = vtanh.pop %v367
    %v510 = vtanh.pop %v372
    %v511 = vtanh.pop %v377
    %v512 = vtanh.pop %v382
    %v513 = vtanh.pop %v387
    %v514 = vtanh.pop %v392
    %v515 = vtanh.pop %v397
    %v516 = vtanh.pop %v402
    %v517 = vtanh.pop %v407
    %v518 = vtanh.pop %v412
    %v519 = vtanh.pop %v417
    %v520 = vtanh.pop %v422
    %v521 = vtanh.pop %v427
    %v522 = vtanh.pop %v432
    %v523 = vtanh.pop %v437
    %v524 = vtanh.pop %v442
    %v525 = vtanh.pop %v447
    %v526 = vtanh.pop %v452
    %v527 = vtanh.pop %v457
    %v528 = vtanh.pop %v462
    %v529 = vtanh.pop %v467
    %v530 = vtanh.pop %v472
    %v531 = vtanh.pop %v477
    %v532 = vtanh.pop %v482
    %v533 = vtanh.pop %v487
    %v534 = vtanh.pop %v492
    %v535 = vtanh.pop %v497
    %v536 = vtanh.pop %v502
    %v537 = vld [vmem:[%s3] sm:$0xff]
    %v538 = vld [vmem:[%s3 + $0x8] sm:$0xff]
    %v539 = vld [vmem:[%s3 + $0x10] sm:$0xff]
    %v540 = vld [vmem:[%s3 + $0x18] sm:$0xff]
    %v541 = vld [vmem:[%s3 + $0x20] sm:$0xff]
    %v542 = vld [vmem:[%s3 + $0x28] sm:$0xff]
    %v543 = vld [vmem:[%s3 + $0x30] sm:$0xff]
    %v544 = vld [vmem:[%s3 + $0x38] sm:$0xff]
    %v545 = vld [vmem:[#allocation6] sm:$0x1]
    %v547 = vlaneseq
    %v548 = vshrl.u32 %v547, 7
    %v549 = vsub.s32 0, %v548
    %v550 = vrot.slane %v545, %v549
    %vm552 = vcmask 523264
    %v554 = vsel %vm552, %v505, 0
    %v557 = vsel %vm552, %v506, 0
    %v560 = vsel %vm552, %v507, 0
    %v563 = vsel %vm552, %v508, 0
    %v566 = vsel %vm552, %v509, 0
    %v569 = vsel %vm552, %v510, 0
    %v572 = vsel %vm552, %v511, 0
    %v575 = vsel %vm552, %v512, 0
    %v578 = vsel %vm552, %v513, 0
    %v581 = vsel %vm552, %v514, 0
    %v584 = vsel %vm552, %v515, 0
    %v587 = vsel %vm552, %v516, 0
    %v590 = vsel %vm552, %v517, 0
    %v593 = vsel %vm552, %v518, 0
    %v596 = vsel %vm552, %v519, 0
    %v599 = vsel %vm552, %v520, 0
    %v602 = vsel %vm552, %v521, 0
    %v605 = vsel %vm552, %v522, 0
    %v608 = vsel %vm552, %v523, 0
    %v611 = vsel %vm552, %v524, 0
    %v614 = vsel %vm552, %v525, 0
    %v617 = vsel %vm552, %v526, 0
    %v620 = vsel %vm552, %v527, 0
    %v623 = vsel %vm552, %v528, 0
    %v626 = vsel %vm552, %v529, 0
    %v629 = vsel %vm552, %v530, 0
    %v632 = vsel %vm552, %v531, 0
    %v635 = vsel %vm552, %v532, 0
    %v638 = vsel %vm552, %v533, 0
    %v641 = vsel %vm552, %v534, 0
    %v644 = vsel %vm552, %v535, 0
    %v647 = vsel %vm552, %v536, 0
    %649 = vmatprep.subr.mxu0 0.0
    %650 = vmatpush1.msra.mxu0 %v537
    %651 = vmatprep.subr.mxu0 0.0
    %652 = vmatpush1.msra.mxu0 %v538
    %653 = vmatprep.subr.mxu0 0.0
    %654 = vmatpush1.msra.mxu0 %v539
    %655 = vmatprep.subr.mxu0 0.0
    %656 = vmatpush1.msra.mxu0 %v540
    %657 = vmatprep.subr.mxu0 0.0
    %658 = vmatpush1.msra.mxu0 %v541
    %659 = vmatprep.subr.mxu0 0.0
    %660 = vmatpush1.msra.mxu0 %v542
    %661 = vmatprep.subr.mxu0 0.0
    %662 = vmatpush1.msra.mxu0 %v543
    %663 = vmatprep.subr.mxu0 0.0
    %664 = vmatpush1.msra.mxu0 %v544
    %665 = vmatprep.subr.mxu0 0.0
    %666 = vmatpush1.msra.mxu0 0.0
    %667 = vmatprep.subr.mxu0 0.0
    %668 = vmatpush1.msra.mxu0 0.0
    %669 = vmatprep.subr.mxu0 0.0
    %670 = vmatpush1.msra.mxu0 0.0
    %671 = vmatprep.subr.mxu0 0.0
    %672 = vmatpush1.msra.mxu0 0.0
    %673 = vmatprep.subr.mxu0 0.0
    %674 = vmatpush1.msra.mxu0 0.0
    %675 = vmatprep.subr.mxu0 0.0
    %676 = vmatpush1.msra.mxu0 0.0
    %677 = vmatprep.subr.mxu0 0.0
    %678 = vmatpush1.msra.mxu0 0.0
    %679 = vmatprep.subr.mxu0 0.0
    %680 = vmatpush1.msra.mxu0 0.0
    %681 = vmatprep.subr.mxu0 0.0
    %682 = vmatpush1.msra.mxu0 0.0
    %683 = vmatprep.subr.mxu0 0.0
    %684 = vmatpush1.msra.mxu0 0.0
    %685 = vmatprep.subr.mxu0 0.0
    %686 = vmatpush1.msra.mxu0 0.0
    %687 = vmatprep.subr.mxu0 0.0
    %688 = vmatpush1.msra.mxu0 0.0
    %689 = vmatprep.subr.mxu0 0.0
    %690 = vmatpush1.msra.mxu0 0.0
    %691 = vmatprep.subr.mxu0 0.0
    %692 = vmatpush1.msra.mxu0 0.0
    %693 = vmatprep.subr.mxu0 0.0
    %694 = vmatpush1.msra.mxu0 0.0
    %695 = vmatprep.subr.mxu0 0.0
    %696 = vmatpush1.msra.mxu0 0.0
    %697 = vmatprep.subr.mxu0 0.0
    %698 = vmatpush1.msra.mxu0 0.0
    %699 = vmatprep.subr.mxu0 0.0
    %700 = vmatpush1.msra.mxu0 0.0
    %701 = vmatprep.subr.mxu0 0.0
    %702 = vmatpush1.msra.mxu0 0.0
    %703 = vmatprep.subr.mxu0 0.0
    %704 = vmatpush1.msra.mxu0 0.0
    %705 = vmatprep.subr.mxu0 0.0
    %706 = vmatpush1.msra.mxu0 0.0
    %707 = vmatprep.subr.mxu0 0.0
    %708 = vmatpush1.msra.mxu0 0.0
    %709 = vmatprep.subr.mxu0 0.0
    %710 = vmatpush1.msra.mxu0 0.0
    %711 = vmatprep.subr.mxu0 0.0
    %712 = vmatpush1.msra.mxu0 0.0
    %713 = vmatprep.mubr.f32.mxu0 0.0
    %714 = vmatmul.mubr.f32.gmra.mrb[0].mxu0 %v554
    %v715 = vpop.f32.mrb[0].mxu0
    %v716 = vadd.f32 %v550, %v715
    %v717 = vpop.f32.mrb[0].mxu0
    %718 = vmatprep.mubr.f32.mxu0 0.0
    %719 = vmatmul.mubr.f32.gmra.mrb[0].mxu0 %v557
    %v720 = vpop.f32.mrb[0].mxu0
    %v721 = vadd.f32 %v550, %v720
    %v722 = vpop.f32.mrb[0].mxu0
    %723 = vmatprep.mubr.f32.mxu0 0.0
    %724 = vmatmul.mubr.f32.gmra.mrb[0].mxu0 %v560
    %v725 = vpop.f32.mrb[0].mxu0
    %v726 = vadd.f32 %v550, %v725
    %v727 = vpop.f32.mrb[0].mxu0
    %728 = vmatprep.mubr.f32.mxu0 0.0
    %729 = vmatmul.mubr.f32.gmra.mrb[0].mxu0 %v563
    %v730 = vpop.f32.mrb[0].mxu0
    %v731 = vadd.f32 %v550, %v730
    %v732 = vpop.f32.mrb[0].mxu0
    %733 = vmatprep.mubr.f32.mxu0 0.0
    %734 = vmatmul.mubr.f32.gmra.mrb[0].mxu0 %v566
    %v735 = vpop.f32.mrb[0].mxu0
    %v736 = vadd.f32 %v550, %v735
    %v737 = vpop.f32.mrb[0].mxu0
    %738 = vmatprep.mubr.f32.mxu0 0.0
    %739 = vmatmul.mubr.f32.gmra.mrb[0].mxu0 %v569
    %v740 = vpop.f32.mrb[0].mxu0
    %v741 = vadd.f32 %v550, %v740
    %v742 = vpop.f32.mrb[0].mxu0
    %743 = vmatprep.mubr.f32.mxu0 0.0
    %744 = vmatmul.mubr.f32.gmra.mrb[0].mxu0 %v572
    %v745 = vpop.f32.mrb[0].mxu0
    %v746 = vadd.f32 %v550, %v745
    %v747 = vpop.f32.mrb[0].mxu0
    %748 = vmatprep.mubr.f32.mxu0 0.0
    %749 = vmatmul.mubr.f32.gmra.mrb[0].mxu0 %v575
    %v750 = vpop.f32.mrb[0].mxu0
    %v751 = vadd.f32 %v550, %v750
    %v752 = vpop.f32.mrb[0].mxu0
    %753 = vmatprep.mubr.f32.mxu0 0.0
    %754 = vmatmul.mubr.f32.gmra.mrb[0].mxu0 %v578
    %v755 = vpop.f32.mrb[0].mxu0
    %v756 = vadd.f32 %v550, %v755
    %v757 = vpop.f32.mrb[0].mxu0
    %758 = vmatprep.mubr.f32.mxu0 0.0
    %759 = vmatmul.mubr.f32.gmra.mrb[0].mxu0 %v581
    %v760 = vpop.f32.mrb[0].mxu0
    %v761 = vadd.f32 %v550, %v760
    %v762 = vpop.f32.mrb[0].mxu0
    %763 = vmatprep.mubr.f32.mxu0 0.0
    %764 = vmatmul.mubr.f32.gmra.mrb[0].mxu0 %v584
    %v765 = vpop.f32.mrb[0].mxu0
    %v766 = vadd.f32 %v550, %v765
    %v767 = vpop.f32.mrb[0].mxu0
    %768 = vmatprep.mubr.f32.mxu0 0.0
    %769 = vmatmul.mubr.f32.gmra.mrb[0].mxu0 %v587
    %v770 = vpop.f32.mrb[0].mxu0
    %v771 = vadd.f32 %v550, %v770
    %v772 = vpop.f32.mrb[0].mxu0
    %773 = vmatprep.mubr.f32.mxu0 0.0
    %774 = vmatmul.mubr.f32.gmra.mrb[0].mxu0 %v590
    %v775 = vpop.f32.mrb[0].mxu0
    %v776 = vadd.f32 %v550, %v775
    %v777 = vpop.f32.mrb[0].mxu0
    %778 = vmatprep.mubr.f32.mxu0 0.0
    %779 = vmatmul.mubr.f32.gmra.mrb[0].mxu0 %v593
    %v780 = vpop.f32.mrb[0].mxu0
    %v781 = vadd.f32 %v550, %v780
    %v782 = vpop.f32.mrb[0].mxu0
    %783 = vmatprep.mubr.f32.mxu0 0.0
    %784 = vmatmul.mubr.f32.gmra.mrb[0].mxu0 %v596
    %v785 = vpop.f32.mrb[0].mxu0
    %v786 = vadd.f32 %v550, %v785
    %v787 = vpop.f32.mrb[0].mxu0
    %788 = vmatprep.mubr.f32.mxu0 0.0
    %789 = vmatmul.mubr.f32.gmra.mrb[0].mxu0 %v599
    %v790 = vpop.f32.mrb[0].mxu0
    %v791 = vadd.f32 %v550, %v790
    %v792 = vpop.f32.mrb[0].mxu0
    %793 = vmatprep.mubr.f32.mxu0 0.0
    %794 = vmatmul.mubr.f32.gmra.mrb[0].mxu0 %v602
    %v795 = vpop.f32.mrb[0].mxu0
    %v796 = vadd.f32 %v550, %v795
    %v797 = vpop.f32.mrb[0].mxu0
    %798 = vmatprep.mubr.f32.mxu0 0.0
    %799 = vmatmul.mubr.f32.gmra.mrb[0].mxu0 %v605
    %v800 = vpop.f32.mrb[0].mxu0
    %v801 = vadd.f32 %v550, %v800
    %v802 = vpop.f32.mrb[0].mxu0
    %803 = vmatprep.mubr.f32.mxu0 0.0
    %804 = vmatmul.mubr.f32.gmra.mrb[0].mxu0 %v608
    %v805 = vpop.f32.mrb[0].mxu0
    %v806 = vadd.f32 %v550, %v805
    %v807 = vpop.f32.mrb[0].mxu0
    %808 = vmatprep.mubr.f32.mxu0 0.0
    %809 = vmatmul.mubr.f32.gmra.mrb[0].mxu0 %v611
    %v810 = vpop.f32.mrb[0].mxu0
    %v811 = vadd.f32 %v550, %v810
    %v812 = vpop.f32.mrb[0].mxu0
    %813 = vmatprep.mubr.f32.mxu0 0.0
    %814 = vmatmul.mubr.f32.gmra.mrb[0].mxu0 %v614
    %v815 = vpop.f32.mrb[0].mxu0
    %v816 = vadd.f32 %v550, %v815
    %v817 = vpop.f32.mrb[0].mxu0
    %818 = vmatprep.mubr.f32.mxu0 0.0
    %819 = vmatmul.mubr.f32.gmra.mrb[0].mxu0 %v617
    %v820 = vpop.f32.mrb[0].mxu0
    %v821 = vadd.f32 %v550, %v820
    %v822 = vpop.f32.mrb[0].mxu0
    %823 = vmatprep.mubr.f32.mxu0 0.0
    %824 = vmatmul.mubr.f32.gmra.mrb[0].mxu0 %v620
    %v825 = vpop.f32.mrb[0].mxu0
    %v826 = vadd.f32 %v550, %v825
    %v827 = vpop.f32.mrb[0].mxu0
    %828 = vmatprep.mubr.f32.mxu0 0.0
    %829 = vmatmul.mubr.f32.gmra.mrb[0].mxu0 %v623
    %v830 = vpop.f32.mrb[0].mxu0
    %v831 = vadd.f32 %v550, %v830
    %v832 = vpop.f32.mrb[0].mxu0
    %833 = vmatprep.mubr.f32.mxu0 0.0
    %834 = vmatmul.mubr.f32.gmra.mrb[0].mxu0 %v626
    %v835 = vpop.f32.mrb[0].mxu0
    %v836 = vadd.f32 %v550, %v835
    %v837 = vpop.f32.mrb[0].mxu0
    %838 = vmatprep.mubr.f32.mxu0 0.0
    %839 = vmatmul.mubr.f32.gmra.mrb[0].mxu0 %v629
    %v840 = vpop.f32.mrb[0].mxu0
    %v841 = vadd.f32 %v550, %v840
    %v842 = vpop.f32.mrb[0].mxu0
    %843 = vmatprep.mubr.f32.mxu0 0.0
    %844 = vmatmul.mubr.f32.gmra.mrb[0].mxu0 %v632
    %v845 = vpop.f32.mrb[0].mxu0
    %v846 = vadd.f32 %v550, %v845
    %v847 = vpop.f32.mrb[0].mxu0
    %848 = vmatprep.mubr.f32.mxu0 0.0
    %849 = vmatmul.mubr.f32.gmra.mrb[0].mxu0 %v635
    %v850 = vpop.f32.mrb[0].mxu0
    %v851 = vadd.f32 %v550, %v850
    %v852 = vpop.f32.mrb[0].mxu0
    %853 = vmatprep.mubr.f32.mxu0 0.0
    %854 = vmatmul.mubr.f32.gmra.mrb[0].mxu0 %v638
    %v855 = vpop.f32.mrb[0].mxu0
    %v856 = vadd.f32 %v550, %v855
    %v857 = vpop.f32.mrb[0].mxu0
    %858 = vmatprep.mubr.f32.mxu0 0.0
    %859 = vmatmul.mubr.f32.gmra.mrb[0].mxu0 %v641
    %v860 = vpop.f32.mrb[0].mxu0
    %v861 = vadd.f32 %v550, %v860
    %v862 = vpop.f32.mrb[0].mxu0
    %863 = vmatprep.mubr.f32.mxu0 0.0
    %864 = vmatmul.mubr.f32.gmra.mrb[0].mxu0 %v644
    %v865 = vpop.f32.mrb[0].mxu0
    %v866 = vadd.f32 %v550, %v865
    %v867 = vpop.f32.mrb[0].mxu0
    %868 = vmatprep.mubr.f32.mxu0 0.0
    %869 = vmatmul.mubr.f32.gmra.mrb[0].mxu0 %v647
    %v870 = vpop.f32.mrb[0].mxu0
    %v871 = vadd.f32 %v550, %v870
    %v872 = vpop.f32.mrb[0].mxu0
    %873 = vdwg.mxu0
    %v874 = vtanh.pop %v716
    %v875 = vtanh.pop %v721
    %v876 = vtanh.pop %v726
    %v877 = vtanh.pop %v731
    %v878 = vtanh.pop %v736
    %v879 = vtanh.pop %v741
    %v880 = vtanh.pop %v746
    %v881 = vtanh.pop %v751
    %v882 = vtanh.pop %v756
    %v883 = vtanh.pop %v761
    %v884 = vtanh.pop %v766
    %v885 = vtanh.pop %v771
    %v886 = vtanh.pop %v776
    %v887 = vtanh.pop %v781
    %v888 = vtanh.pop %v786
    %v889 = vtanh.pop %v791
    %v890 = vtanh.pop %v796
    %v891 = vtanh.pop %v801
    %v892 = vtanh.pop %v806
    %v893 = vtanh.pop %v811
    %v894 = vtanh.pop %v816
    %v895 = vtanh.pop %v821
    %v896 = vtanh.pop %v826
    %v897 = vtanh.pop %v831
    %v898 = vtanh.pop %v836
    %v899 = vtanh.pop %v841
    %v900 = vtanh.pop %v846
    %v901 = vtanh.pop %v851
    %v902 = vtanh.pop %v856
    %v903 = vtanh.pop %v861
    %v904 = vtanh.pop %v866
    %v905 = vtanh.pop %v871
    %v906 = vld [vmem:[%s5] sm:$0xff]
    %v907 = vld [vmem:[%s5 + $0x8] sm:$0xff]
    %v908 = vld [vmem:[%s5 + $0x10] sm:$0xff]
    %v909 = vld [vmem:[%s5 + $0x18] sm:$0xff]
    %v910 = vld [vmem:[%s5 + $0x20] sm:$0xff]
    %v911 = vld [vmem:[%s5 + $0x28] sm:$0xff]
    %v912 = vld [vmem:[%s5 + $0x30] sm:$0xff]
    %v913 = vld [vmem:[%s5 + $0x38] sm:$0xff]
    %v914 = vld [vmem:[#allocation8] sm:$0x1]
    %v916 = vlaneseq
    %v917 = vshrl.u32 %v916, 7
    %v918 = vsub.s32 0, %v917
    %v919 = vrot.slane %v914, %v918
    %v922 = vsel %vm552, %v874, 0
    %v925 = vsel %vm552, %v875, 0
    %v928 = vsel %vm552, %v876, 0
    %v931 = vsel %vm552, %v877, 0
    %v934 = vsel %vm552, %v878, 0
    %v937 = vsel %vm552, %v879, 0
    %v940 = vsel %vm552, %v880, 0
    %v943 = vsel %vm552, %v881, 0
    %v946 = vsel %vm552, %v882, 0
    %v949 = vsel %vm552, %v883, 0
    %v952 = vsel %vm552, %v884, 0
    %v955 = vsel %vm552, %v885, 0
    %v958 = vsel %vm552, %v886, 0
    %v961 = vsel %vm552, %v887, 0
    %v964 = vsel %vm552, %v888, 0
    %v967 = vsel %vm552, %v889, 0
    %v970 = vsel %vm552, %v890, 0
    %v973 = vsel %vm552, %v891, 0
    %v976 = vsel %vm552, %v892, 0
    %v979 = vsel %vm552, %v893, 0
    %v982 = vsel %vm552, %v894, 0
    %v985 = vsel %vm552, %v895, 0
    %v988 = vsel %vm552, %v896, 0
    %v991 = vsel %vm552, %v897, 0
    %v994 = vsel %vm552, %v898, 0
    %v997 = vsel %vm552, %v899, 0
    %v1000 = vsel %vm552, %v900, 0
    %v1003 = vsel %vm552, %v901, 0
    %v1006 = vsel %vm552, %v902, 0
    %v1009 = vsel %vm552, %v903, 0
    %v1012 = vsel %vm552, %v904, 0
    %v1015 = vsel %vm552, %v905, 0
    %1017 = vmatprep.subr.mxu0 0.0
    %1018 = vmatpush1.msra.mxu0 %v906
    %1019 = vmatprep.subr.mxu0 0.0
    %1020 = vmatpush1.msra.mxu0 %v907
    %1021 = vmatprep.subr.mxu0 0.0
    %1022 = vmatpush1.msra.mxu0 %v908
    %1023 = vmatprep.subr.mxu0 0.0
    %1024 = vmatpush1.msra.mxu0 %v909
    %1025 = vmatprep.subr.mxu0 0.0
    %1026 = vmatpush1.msra.mxu0 %v910
    %1027 = vmatprep.subr.mxu0 0.0
    %1028 = vmatpush1.msra.mxu0 %v911
    %1029 = vmatprep.subr.mxu0 0.0
    %1030 = vmatpush1.msra.mxu0 %v912
    %1031 = vmatprep.subr.mxu0 0.0
    %1032 = vmatpush1.msra.mxu0 %v913
    %1033 = vmatprep.subr.mxu0 0.0
    %1034 = vmatpush1.msra.mxu0 0.0
    %1035 = vmatprep.subr.mxu0 0.0
    %1036 = vmatpush1.msra.mxu0 0.0
    %1037 = vmatprep.subr.mxu0 0.0
    %1038 = vmatpush1.msra.mxu0 0.0
    %1039 = vmatprep.subr.mxu0 0.0
    %1040 = vmatpush1.msra.mxu0 0.0
    %1041 = vmatprep.subr.mxu0 0.0
    %1042 = vmatpush1.msra.mxu0 0.0
    %1043 = vmatprep.subr.mxu0 0.0
    %1044 = vmatpush1.msra.mxu0 0.0
    %1045 = vmatprep.subr.mxu0 0.0
    %1046 = vmatpush1.msra.mxu0 0.0
    %1047 = vmatprep.subr.mxu0 0.0
    %1048 = vmatpush1.msra.mxu0 0.0
    %1049 = vmatprep.subr.mxu0 0.0
    %1050 = vmatpush1.msra.mxu0 0.0
    %1051 = vmatprep.subr.mxu0 0.0
    %1052 = vmatpush1.msra.mxu0 0.0
    %1053 = vmatprep.subr.mxu0 0.0
    %1054 = vmatpush1.msra.mxu0 0.0
    %1055 = vmatprep.subr.mxu0 0.0
    %1056 = vmatpush1.msra.mxu0 0.0
    %1057 = vmatprep.subr.mxu0 0.0
    %1058 = vmatpush1.msra.mxu0 0.0
    %1059 = vmatprep.subr.mxu0 0.0
    %1060 = vmatpush1.msra.mxu0 0.0
    %1061 = vmatprep.subr.mxu0 0.0
    %1062 = vmatpush1.msra.mxu0 0.0
    %1063 = vmatprep.subr.mxu0 0.0
    %1064 = vmatpush1.msra.mxu0 0.0
    %1065 = vmatprep.subr.mxu0 0.0
    %1066 = vmatpush1.msra.mxu0 0.0
    %1067 = vmatprep.subr.mxu0 0.0
    %1068 = vmatpush1.msra.mxu0 0.0
    %1069 = vmatprep.subr.mxu0 0.0
    %1070 = vmatpush1.msra.mxu0 0.0
    %1071 = vmatprep.subr.mxu0 0.0
    %1072 = vmatpush1.msra.mxu0 0.0
    %1073 = vmatprep.subr.mxu0 0.0
    %1074 = vmatpush1.msra.mxu0 0.0
    %1075 = vmatprep.subr.mxu0 0.0
    %1076 = vmatpush1.msra.mxu0 0.0
    %1077 = vmatprep.subr.mxu0 0.0
    %1078 = vmatpush1.msra.mxu0 0.0
    %1079 = vmatprep.subr.mxu0 0.0
    %1080 = vmatpush1.msra.mxu0 0.0
    %1081 = vmatprep.mubr.f32.mxu0 0.0
    %1082 = vmatmul.mubr.f32.gmra.mrb[0].mxu0 %v922
    %v1083 = vpop.f32.mrb[0].mxu0
    %v1084 = vadd.f32 %v919, %v1083
    %v1085 = vpop.f32.mrb[0].mxu0
    %1086 = vmatprep.mubr.f32.mxu0 0.0
    %1087 = vmatmul.mubr.f32.gmra.mrb[0].mxu0 %v925
    %v1088 = vpop.f32.mrb[0].mxu0
    %v1089 = vadd.f32 %v919, %v1088
    %v1090 = vpop.f32.mrb[0].mxu0
    %1091 = vmatprep.mubr.f32.mxu0 0.0
    %1092 = vmatmul.mubr.f32.gmra.mrb[0].mxu0 %v928
    %v1093 = vpop.f32.mrb[0].mxu0
    %v1094 = vadd.f32 %v919, %v1093
    %v1095 = vpop.f32.mrb[0].mxu0
    %1096 = vmatprep.mubr.f32.mxu0 0.0
    %1097 = vmatmul.mubr.f32.gmra.mrb[0].mxu0 %v931
    %v1098 = vpop.f32.mrb[0].mxu0
    %v1099 = vadd.f32 %v919, %v1098
    %v1100 = vpop.f32.mrb[0].mxu0
    %1101 = vmatprep.mubr.f32.mxu0 0.0
    %1102 = vmatmul.mubr.f32.gmra.mrb[0].mxu0 %v934
    %v1103 = vpop.f32.mrb[0].mxu0
    %v1104 = vadd.f32 %v919, %v1103
    %v1105 = vpop.f32.mrb[0].mxu0
    %1106 = vmatprep.mubr.f32.mxu0 0.0
    %1107 = vmatmul.mubr.f32.gmra.mrb[0].mxu0 %v937
    %v1108 = vpop.f32.mrb[0].mxu0
    %v1109 = vadd.f32 %v919, %v1108
    %v1110 = vpop.f32.mrb[0].mxu0
    %1111 = vmatprep.mubr.f32.mxu0 0.0
    %1112 = vmatmul.mubr.f32.gmra.mrb[0].mxu0 %v940
    %v1113 = vpop.f32.mrb[0].mxu0
    %v1114 = vadd.f32 %v919, %v1113
    %v1115 = vpop.f32.mrb[0].mxu0
    %1116 = vmatprep.mubr.f32.mxu0 0.0
    %1117 = vmatmul.mubr.f32.gmra.mrb[0].mxu0 %v943
    %v1118 = vpop.f32.mrb[0].mxu0
    %v1119 = vadd.f32 %v919, %v1118
    %v1120 = vpop.f32.mrb[0].mxu0
    %1121 = vmatprep.mubr.f32.mxu0 0.0
    %1122 = vmatmul.mubr.f32.gmra.mrb[0].mxu0 %v946
    %v1123 = vpop.f32.mrb[0].mxu0
    %v1124 = vadd.f32 %v919, %v1123
    %v1125 = vpop.f32.mrb[0].mxu0
    %1126 = vmatprep.mubr.f32.mxu0 0.0
    %1127 = vmatmul.mubr.f32.gmra.mrb[0].mxu0 %v949
    %v1128 = vpop.f32.mrb[0].mxu0
    %v1129 = vadd.f32 %v919, %v1128
    %v1130 = vpop.f32.mrb[0].mxu0
    %1131 = vmatprep.mubr.f32.mxu0 0.0
    %1132 = vmatmul.mubr.f32.gmra.mrb[0].mxu0 %v952
    %v1133 = vpop.f32.mrb[0].mxu0
    %v1134 = vadd.f32 %v919, %v1133
    %v1135 = vpop.f32.mrb[0].mxu0
    %1136 = vmatprep.mubr.f32.mxu0 0.0
    %1137 = vmatmul.mubr.f32.gmra.mrb[0].mxu0 %v955
    %v1138 = vpop.f32.mrb[0].mxu0
    %v1139 = vadd.f32 %v919, %v1138
    %v1140 = vpop.f32.mrb[0].mxu0
    %1141 = vmatprep.mubr.f32.mxu0 0.0
    %1142 = vmatmul.mubr.f32.gmra.mrb[0].mxu0 %v958
    %v1143 = vpop.f32.mrb[0].mxu0
    %v1144 = vadd.f32 %v919, %v1143
    %v1145 = vpop.f32.mrb[0].mxu0
    %1146 = vmatprep.mubr.f32.mxu0 0.0
    %1147 = vmatmul.mubr.f32.gmra.mrb[0].mxu0 %v961
    %v1148 = vpop.f32.mrb[0].mxu0
    %v1149 = vadd.f32 %v919, %v1148
    %v1150 = vpop.f32.mrb[0].mxu0
    %1151 = vmatprep.mubr.f32.mxu0 0.0
    %1152 = vmatmul.mubr.f32.gmra.mrb[0].mxu0 %v964
    %v1153 = vpop.f32.mrb[0].mxu0
    %v1154 = vadd.f32 %v919, %v1153
    %v1155 = vpop.f32.mrb[0].mxu0
    %1156 = vmatprep.mubr.f32.mxu0 0.0
    %1157 = vmatmul.mubr.f32.gmra.mrb[0].mxu0 %v967
    %v1158 = vpop.f32.mrb[0].mxu0
    %v1159 = vadd.f32 %v919, %v1158
    %v1160 = vpop.f32.mrb[0].mxu0
    %1161 = vmatprep.mubr.f32.mxu0 0.0
    %1162 = vmatmul.mubr.f32.gmra.mrb[0].mxu0 %v970
    %v1163 = vpop.f32.mrb[0].mxu0
    %v1164 = vadd.f32 %v919, %v1163
    %v1165 = vpop.f32.mrb[0].mxu0
    %1166 = vmatprep.mubr.f32.mxu0 0.0
    %1167 = vmatmul.mubr.f32.gmra.mrb[0].mxu0 %v973
    %v1168 = vpop.f32.mrb[0].mxu0
    %v1169 = vadd.f32 %v919, %v1168
    %v1170 = vpop.f32.mrb[0].mxu0
    %1171 = vmatprep.mubr.f32.mxu0 0.0
    %1172 = vmatmul.mubr.f32.gmra.mrb[0].mxu0 %v976
    %v1173 = vpop.f32.mrb[0].mxu0
    %v1174 = vadd.f32 %v919, %v1173
    %v1175 = vpop.f32.mrb[0].mxu0
    %1176 = vmatprep.mubr.f32.mxu0 0.0
    %1177 = vmatmul.mubr.f32.gmra.mrb[0].mxu0 %v979
    %v1178 = vpop.f32.mrb[0].mxu0
    %v1179 = vadd.f32 %v919, %v1178
    %v1180 = vpop.f32.mrb[0].mxu0
    %1181 = vmatprep.mubr.f32.mxu0 0.0
    %1182 = vmatmul.mubr.f32.gmra.mrb[0].mxu0 %v982
    %v1183 = vpop.f32.mrb[0].mxu0
    %v1184 = vadd.f32 %v919, %v1183
    %v1185 = vpop.f32.mrb[0].mxu0
    %1186 = vmatprep.mubr.f32.mxu0 0.0
    %1187 = vmatmul.mubr.f32.gmra.mrb[0].mxu0 %v985
    %v1188 = vpop.f32.mrb[0].mxu0
    %v1189 = vadd.f32 %v919, %v1188
    %v1190 = vpop.f32.mrb[0].mxu0
    %1191 = vmatprep.mubr.f32.mxu0 0.0
    %1192 = vmatmul.mubr.f32.gmra.mrb[0].mxu0 %v988
    %v1193 = vpop.f32.mrb[0].mxu0
    %v1194 = vadd.f32 %v919, %v1193
    %v1195 = vpop.f32.mrb[0].mxu0
    %1196 = vmatprep.mubr.f32.mxu0 0.0
    %1197 = vmatmul.mubr.f32.gmra.mrb[0].mxu0 %v991
    %v1198 = vpop.f32.mrb[0].mxu0
    %v1199 = vadd.f32 %v919, %v1198
    %v1200 = vpop.f32.mrb[0].mxu0
    %1201 = vmatprep.mubr.f32.mxu0 0.0
    %1202 = vmatmul.mubr.f32.gmra.mrb[0].mxu0 %v994
    %v1203 = vpop.f32.mrb[0].mxu0
    %v1204 = vadd.f32 %v919, %v1203
    %v1205 = vpop.f32.mrb[0].mxu0
    %1206 = vmatprep.mubr.f32.mxu0 0.0
    %1207 = vmatmul.mubr.f32.gmra.mrb[0].mxu0 %v997
    %v1208 = vpop.f32.mrb[0].mxu0
    %v1209 = vadd.f32 %v919, %v1208
    %v1210 = vpop.f32.mrb[0].mxu0
    %1211 = vmatprep.mubr.f32.mxu0 0.0
    %1212 = vmatmul.mubr.f32.gmra.mrb[0].mxu0 %v1000
    %v1213 = vpop.f32.mrb[0].mxu0
    %v1214 = vadd.f32 %v919, %v1213
    %v1215 = vpop.f32.mrb[0].mxu0
    %1216 = vmatprep.mubr.f32.mxu0 0.0
    %1217 = vmatmul.mubr.f32.gmra.mrb[0].mxu0 %v1003
    %v1218 = vpop.f32.mrb[0].mxu0
    %v1219 = vadd.f32 %v919, %v1218
    %v1220 = vpop.f32.mrb[0].mxu0
    %1221 = vmatprep.mubr.f32.mxu0 0.0
    %1222 = vmatmul.mubr.f32.gmra.mrb[0].mxu0 %v1006
    %v1223 = vpop.f32.mrb[0].mxu0
    %v1224 = vadd.f32 %v919, %v1223
    %v1225 = vpop.f32.mrb[0].mxu0
    %1226 = vmatprep.mubr.f32.mxu0 0.0
    %1227 = vmatmul.mubr.f32.gmra.mrb[0].mxu0 %v1009
    %v1228 = vpop.f32.mrb[0].mxu0
    %v1229 = vadd.f32 %v919, %v1228
    %v1230 = vpop.f32.mrb[0].mxu0
    %1231 = vmatprep.mubr.f32.mxu0 0.0
    %1232 = vmatmul.mubr.f32.gmra.mrb[0].mxu0 %v1012
    %v1233 = vpop.f32.mrb[0].mxu0
    %v1234 = vadd.f32 %v919, %v1233
    %v1235 = vpop.f32.mrb[0].mxu0
    %1236 = vmatprep.mubr.f32.mxu0 0.0
    %1237 = vmatmul.mubr.f32.gmra.mrb[0].mxu0 %v1015
    %v1238 = vpop.f32.mrb[0].mxu0
    %v1239 = vadd.f32 %v919, %v1238
    %v1240 = vpop.f32.mrb[0].mxu0
    %1241 = vdwg.mxu0
    %vm1242 = vcmask 130048
    %v1243 = vsel %vm1242, %v1084, 0.0
    %v1244 = vsel %vm1242, %v1104, 0.0
    %v1245 = vadd.f32 %v1243, %v1244
    %v1246 = vsel %vm1242, %v1124, 0.0
    %v1247 = vadd.f32 %v1245, %v1246
    %v1248 = vsel %vm1242, %v1144, 0.0
    %v1249 = vadd.f32 %v1247, %v1248
    %v1250 = vsel %vm1242, %v1164, 0.0
    %v1251 = vadd.f32 %v1249, %v1250
    %v1252 = vsel %vm1242, %v1184, 0.0
    %v1253 = vadd.f32 %v1251, %v1252
    %v1254 = vsel %vm1242, %v1204, 0.0
    %v1255 = vadd.f32 %v1253, %v1254
    %v1256 = vsel %vm1242, %v1224, 0.0
    %v1257 = vadd.f32 %v1255, %v1256
    %v1258 = vsel %vm1242, %v1089, 0.0
    %v1259 = vsel %vm1242, %v1109, 0.0
    %v1260 = vadd.f32 %v1258, %v1259
    %v1261 = vsel %vm1242, %v1129, 0.0
    %v1262 = vadd.f32 %v1260, %v1261
    %v1263 = vsel %vm1242, %v1149, 0.0
    %v1264 = vadd.f32 %v1262, %v1263
    %v1265 = vsel %vm1242, %v1169, 0.0
    %v1266 = vadd.f32 %v1264, %v1265
    %v1267 = vsel %vm1242, %v1189, 0.0
    %v1268 = vadd.f32 %v1266, %v1267
    %v1269 = vsel %vm1242, %v1209, 0.0
    %v1270 = vadd.f32 %v1268, %v1269
    %v1271 = vsel %vm1242, %v1229, 0.0
    %v1272 = vadd.f32 %v1270, %v1271
    %v1273 = vsel %vm1242, %v1094, 0.0
    %v1274 = vsel %vm1242, %v1114, 0.0
    %v1275 = vadd.f32 %v1273, %v1274
    %v1276 = vsel %vm1242, %v1134, 0.0
    %v1277 = vadd.f32 %v1275, %v1276
    %v1278 = vsel %vm1242, %v1154, 0.0
    %v1279 = vadd.f32 %v1277, %v1278
    %v1280 = vsel %vm1242, %v1174, 0.0
    %v1281 = vadd.f32 %v1279, %v1280
    %v1282 = vsel %vm1242, %v1194, 0.0
    %v1283 = vadd.f32 %v1281, %v1282
    %v1284 = vsel %vm1242, %v1214, 0.0
    %v1285 = vadd.f32 %v1283, %v1284
    %v1286 = vsel %vm1242, %v1234, 0.0
    %v1287 = vadd.f32 %v1285, %v1286
    %v1288 = vsel %vm1242, %v1099, 0.0
    %v1289 = vsel %vm1242, %v1119, 0.0
    %v1290 = vadd.f32 %v1288, %v1289
    %v1291 = vsel %vm1242, %v1139, 0.0
    %v1292 = vadd.f32 %v1290, %v1291
    %v1293 = vsel %vm1242, %v1159, 0.0
    %v1294 = vadd.f32 %v1292, %v1293
    %v1295 = vsel %vm1242, %v1179, 0.0
    %v1296 = vadd.f32 %v1294, %v1295
    %v1297 = vsel %vm1242, %v1199, 0.0
    %v1298 = vadd.f32 %v1296, %v1297
    %v1299 = vsel %vm1242, %v1219, 0.0
    %v1300 = vadd.f32 %v1298, %v1299
    %v1301 = vsel %vm1242, %v1239, 0.0
    %v1302 = vadd.f32 %v1300, %v1301
    %v1303 = vmul.f32 %v1257, 0.125
    %v1304 = vmul.f32 %v1272, 0.125
    %v1305 = vmul.f32 %v1287, 0.125
    %v1306 = vmul.f32 %v1302, 0.125
    %v1307 = vld [vmem:[#allocation11] sm:$0xff]
    %v1308 = vld [vmem:[#allocation11 + $0x8] sm:$0xff]
    %v1309 = vld [vmem:[#allocation12] sm:$0x1]
    %v1311 = vlaneseq
    %v1312 = vshrl.u32 %v1311, 7
    %v1313 = vsub.s32 0, %v1312
    %v1314 = vrot.slane %v1309, %v1313
    %v1317 = vsel %vm1242, %v1303, 0
    %v1320 = vsel %vm1242, %v1304, 0
    %v1323 = vsel %vm1242, %v1305, 0
    %v1326 = vsel %vm1242, %v1306, 0
    %1328 = vmatprep.subr.mxu0 0.0
    %1329 = vmatpush1.msra.mxu0 %v1307
    %1330 = vmatprep.subr.mxu0 0.0
    %1331 = vmatpush1.msra.mxu0 %v1308
    %1332 = vmatprep.subr.mxu0 0.0
    %1333 = vmatpush1.msra.mxu0 0.0
    %1334 = vmatprep.subr.mxu0 0.0
    %1335 = vmatpush1.msra.mxu0 0.0
    %1336 = vmatprep.subr.mxu0 0.0
    %1337 = vmatpush1.msra.mxu0 0.0
    %1338 = vmatprep.subr.mxu0 0.0
    %1339 = vmatpush1.msra.mxu0 0.0
    %1340 = vmatprep.subr.mxu0 0.0
    %1341 = vmatpush1.msra.mxu0 0.0
    %1342 = vmatprep.subr.mxu0 0.0
    %1343 = vmatpush1.msra.mxu0 0.0
    %1344 = vmatprep.subr.mxu0 0.0
    %1345 = vmatpush1.msra.mxu0 0.0
    %1346 = vmatprep.subr.mxu0 0.0
    %1347 = vmatpush1.msra.mxu0 0.0
    %1348 = vmatprep.subr.mxu0 0.0
    %1349 = vmatpush1.msra.mxu0 0.0
    %1350 = vmatprep.subr.mxu0 0.0
    %1351 = vmatpush1.msra.mxu0 0.0
    %1352 = vmatprep.subr.mxu0 0.0
    %1353 = vmatpush1.msra.mxu0 0.0
    %1354 = vmatprep.subr.mxu0 0.0
    %1355 = vmatpush1.msra.mxu0 0.0
    %1356 = vmatprep.subr.mxu0 0.0
    %1357 = vmatpush1.msra.mxu0 0.0
    %1358 = vmatprep.subr.mxu0 0.0
    %1359 = vmatpush1.msra.mxu0 0.0
    %1360 = vmatprep.subr.mxu0 0.0
    %1361 = vmatpush1.msra.mxu0 0.0
    %1362 = vmatprep.subr.mxu0 0.0
    %1363 = vmatpush1.msra.mxu0 0.0
    %1364 = vmatprep.subr.mxu0 0.0
    %1365 = vmatpush1.msra.mxu0 0.0
    %1366 = vmatprep.subr.mxu0 0.0
    %1367 = vmatpush1.msra.mxu0 0.0
    %1368 = vmatprep.subr.mxu0 0.0
    %1369 = vmatpush1.msra.mxu0 0.0
    %1370 = vmatprep.subr.mxu0 0.0
    %1371 = vmatpush1.msra.mxu0 0.0
    %1372 = vmatprep.subr.mxu0 0.0
    %1373 = vmatpush1.msra.mxu0 0.0
    %1374 = vmatprep.subr.mxu0 0.0
    %1375 = vmatpush1.msra.mxu0 0.0
    %1376 = vmatprep.subr.mxu0 0.0
    %1377 = vmatpush1.msra.mxu0 0.0
    %1378 = vmatprep.subr.mxu0 0.0
    %1379 = vmatpush1.msra.mxu0 0.0
    %1380 = vmatprep.subr.mxu0 0.0
    %1381 = vmatpush1.msra.mxu0 0.0
    %1382 = vmatprep.subr.mxu0 0.0
    %1383 = vmatpush1.msra.mxu0 0.0
    %1384 = vmatprep.subr.mxu0 0.0
    %1385 = vmatpush1.msra.mxu0 0.0
    %1386 = vmatprep.subr.mxu0 0.0
    %1387 = vmatpush1.msra.mxu0 0.0
    %1388 = vmatprep.subr.mxu0 0.0
    %1389 = vmatpush1.msra.mxu0 0.0
    %1390 = vmatprep.subr.mxu0 0.0
    %1391 = vmatpush1.msra.mxu0 0.0
    %1392 = vmatprep.mubr.f32.mxu0 0.0
    %1393 = vmatmul.mubr.f32.gmra.mrb[0].mxu0 %v1317
    %v1394 = vpop.f32.mrb[0].mxu0
    %v1395 = vadd.f32 %v1314, %v1394
    %v1396 = vpop.f32.mrb[0].mxu0
    %1397 = vmatprep.mubr.f32.mxu0 0.0
    %1398 = vmatmul.mubr.f32.gmra.mrb[0].mxu0 %v1320
    %v1399 = vpop.f32.mrb[0].mxu0
    %v1400 = vadd.f32 %v1314, %v1399
    %v1401 = vpop.f32.mrb[0].mxu0
    %1402 = vmatprep.mubr.f32.mxu0 0.0
    %1403 = vmatmul.mubr.f32.gmra.mrb[0].mxu0 %v1323
    %v1404 = vpop.f32.mrb[0].mxu0
    %v1405 = vadd.f32 %v1314, %v1404
    %v1406 = vpop.f32.mrb[0].mxu0
    %1407 = vmatprep.mubr.f32.mxu0 0.0
    %1408 = vmatmul.mubr.f32.gmra.mrb[0].mxu0 %v1326
    %v1409 = vpop.f32.mrb[0].mxu0
    %v1410 = vadd.f32 %v1314, %v1409
    %v1411 = vpop.f32.mrb[0].mxu0
    %1412 = vdwg.mxu0
    %v1413 = vtanh.pop %v1395
    %v1414 = vtanh.pop %v1400
    %v1415 = vtanh.pop %v1405
    %v1416 = vtanh.pop %v1410
    %v1417 = vld [vmem:[%s12] sm:$0xff]
    %v1418 = vld [vmem:[%s12 + $0x8] sm:$0xff]
    %v1419 = vld [vmem:[%s12 + $0x10] sm:$0xff]
    %v1420 = vld [vmem:[%s12 + $0x18] sm:$0xff]
    %v1421 = vld [vmem:[%s13] sm:$0x1]
    %v1423 = vlaneseq
    %v1424 = vshrl.u32 %v1423, 7
    %v1425 = vsub.s32 0, %v1424
    %v1426 = vrot.slane %v1421, %v1425
    %v1429 = vsel %vm183, %v1413, 0
    %v1432 = vsel %vm183, %v1414, 0
    %v1435 = vsel %vm183, %v1415, 0
    %v1438 = vsel %vm183, %v1416, 0
    %1440 = vmatprep.subr.mxu0 0.0
    %1441 = vmatpush1.msra.mxu0 %v1417
    %1442 = vmatprep.subr.mxu0 0.0
    %1443 = vmatpush1.msra.mxu0 %v1418
    %1444 = vmatprep.subr.mxu0 0.0
    %1445 = vmatpush1.msra.mxu0 %v1419
    %1446 = vmatprep.subr.mxu0 0.0
    %1447 = vmatpush1.msra.mxu0 %v1420
    %1448 = vmatprep.subr.mxu0 0.0
    %1449 = vmatpush1.msra.mxu0 0.0
    %1450 = vmatprep.subr.mxu0 0.0
    %1451 = vmatpush1.msra.mxu0 0.0
    %1452 = vmatprep.subr.mxu0 0.0
    %1453 = vmatpush1.msra.mxu0 0.0
    %1454 = vmatprep.subr.mxu0 0.0
    %1455 = vmatpush1.msra.mxu0 0.0
    %1456 = vmatprep.subr.mxu0 0.0
    %1457 = vmatpush1.msra.mxu0 0.0
    %1458 = vmatprep.subr.mxu0 0.0
    %1459 = vmatpush1.msra.mxu0 0.0
    %1460 = vmatprep.subr.mxu0 0.0
    %1461 = vmatpush1.msra.mxu0 0.0
    %1462 = vmatprep.subr.mxu0 0.0
    %1463 = vmatpush1.msra.mxu0 0.0
    %1464 = vmatprep.subr.mxu0 0.0
    %1465 = vmatpush1.msra.mxu0 0.0
    %1466 = vmatprep.subr.mxu0 0.0
    %1467 = vmatpush1.msra.mxu0 0.0
    %1468 = vmatprep.subr.mxu0 0.0
    %1469 = vmatpush1.msra.mxu0 0.0
    %1470 = vmatprep.subr.mxu0 0.0
    %1471 = vmatpush1.msra.mxu0 0.0
    %1472 = vmatprep.subr.mxu0 0.0
    %1473 = vmatpush1.msra.mxu0 0.0
    %1474 = vmatprep.subr.mxu0 0.0
    %1475 = vmatpush1.msra.mxu0 0.0
    %1476 = vmatprep.subr.mxu0 0.0
    %1477 = vmatpush1.msra.mxu0 0.0
    %1478 = vmatprep.subr.mxu0 0.0
    %1479 = vmatpush1.msra.mxu0 0.0
    %1480 = vmatprep.subr.mxu0 0.0
    %1481 = vmatpush1.msra.mxu0 0.0
    %1482 = vmatprep.subr.mxu0 0.0
    %1483 = vmatpush1.msra.mxu0 0.0
    %1484 = vmatprep.subr.mxu0 0.0
    %1485 = vmatpush1.msra.mxu0 0.0
    %1486 = vmatprep.subr.mxu0 0.0
    %1487 = vmatpush1.msra.mxu0 0.0
    %1488 = vmatprep.subr.mxu0 0.0
    %1489 = vmatpush1.msra.mxu0 0.0
    %1490 = vmatprep.subr.mxu0 0.0
    %1491 = vmatpush1.msra.mxu0 0.0
    %1492 = vmatprep.subr.mxu0 0.0
    %1493 = vmatpush1.msra.mxu0 0.0
    %1494 = vmatprep.subr.mxu0 0.0
    %1495 = vmatpush1.msra.mxu0 0.0
    %1496 = vmatprep.subr.mxu0 0.0
    %1497 = vmatpush1.msra.mxu0 0.0
    %1498 = vmatprep.subr.mxu0 0.0
    %1499 = vmatpush1.msra.mxu0 0.0
    %1500 = vmatprep.subr.mxu0 0.0
    %1501 = vmatpush1.msra.mxu0 0.0
    %1502 = vmatprep.subr.mxu0 0.0
    %1503 = vmatpush1.msra.mxu0 0.0
    %1504 = vmatprep.mubr.f32.mxu0 0.0
    %1505 = vmatmul.mubr.f32.gmra.mrb[0].mxu0 %v1429
    %v1506 = vpop.f32.mrb[0].mxu0
    %v1507 = vadd.f32 %v1426, %v1506
    %v1508 = vpop.f32.mrb[0].mxu0
    %1509 = vmatprep.mubr.f32.mxu0 0.0
    %1510 = vmatmul.mubr.f32.gmra.mrb[0].mxu0 %v1432
    %v1511 = vpop.f32.mrb[0].mxu0
    %v1512 = vadd.f32 %v1426, %v1511
    %v1513 = vpop.f32.mrb[0].mxu0
    %1514 = vmatprep.mubr.f32.mxu0 0.0
    %1515 = vmatmul.mubr.f32.gmra.mrb[0].mxu0 %v1435
    %v1516 = vpop.f32.mrb[0].mxu0
    %v1517 = vadd.f32 %v1426, %v1516
    %v1518 = vpop.f32.mrb[0].mxu0
    %1519 = vmatprep.mubr.f32.mxu0 0.0
    %1520 = vmatmul.mubr.f32.gmra.mrb[0].mxu0 %v1438
    %v1521 = vpop.f32.mrb[0].mxu0
    %v1522 = vadd.f32 %v1426, %v1521
    %v1523 = vpop.f32.mrb[0].mxu0
    %1524 = vdwg.mxu0
    %v1525 = vtanh.pop %v1507
    %v1526 = vtanh.pop %v1512
    %v1527 = vtanh.pop %v1517
    %v1528 = vtanh.pop %v1522
    %v1529 = vld [vmem:[%s16] sm:$0x1]
    %v1531 = vlaneseq
    %v1532 = vshrl.u32 %v1531, 7
    %v1533 = vsub.s32 0, %v1532
    %v1534 = vrot.slane %v1529, %v1533
    %v1536 = vmul.f32 %v1525, %v1534
    %v1537 = vmul.f32 %v1526, %v1534
    %v1538 = vmul.f32 %v1527, %v1534
    %v1539 = vmul.f32 %v1528, %v1534
    %v1540 = vsel %vm183, %v1536, 0.0
    %1541 = vadd.xlane.f32.xlu0 %v1540
    %v1542 = vpop.xlane.xlu0 %1541
    %v1543 = vsel %vm183, %v1537, 0.0
    %1544 = vadd.xlane.f32.xlu0 %v1543
    %v1545 = vpop.xlane.xlu0 %1544
    %v1546 = vsel %vm183, %v1538, 0.0
    %1547 = vadd.xlane.f32.xlu0 %v1546
    %v1548 = vpop.xlane.xlu0 %1547
    %v1549 = vsel %vm183, %v1539, 0.0
    %1550 = vadd.xlane.f32.xlu0 %v1549
    %v1551 = vpop.xlane.xlu0 %1550
    %v1552 = vld [vmem:[#allocation2] sm:$0x1]
    %v1554 = vlaneseq
    %v1555 = vshrl.u32 %v1554, 7
    %v1556 = vsub.s32 0, %v1555
    %v1557 = vrot.slane %v1552, %v1556
    %v1559 = vadd.f32 %v1542, %v1557
    %v1560 = vadd.f32 %v1545, %v1557
    %v1561 = vadd.f32 %v1548, %v1557
    %v1562 = vadd.f32 %v1551, %v1557
    %vm1563 = vcmask 7168
    %1564 = vst.msk [vmem:[%s18] sm:$0xff] %vm1563, %v1559
    %1565 = vst.msk [vmem:[%s18 + $0x8] sm:$0xff] %vm1563, %v1560
    %1566 = vst.msk [vmem:[%s18 + $0x10] sm:$0xff] %vm1563, %v1561
    %1567 = vst.msk [vmem:[%s18 + $0x18] sm:$0xff] %vm1563, %v1562
    %v1568 = vmul.f32 %v1525, %v1525
    %v1569 = vmul.f32 %v1526, %v1526
    %v1570 = vmul.f32 %v1527, %v1527
    %v1571 = vmul.f32 %v1528, %v1528
    %v1572 = vsub.f32 1.0, %v1568
    %v1573 = vsub.f32 1.0, %v1569
    %v1574 = vsub.f32 1.0, %v1570
    %v1575 = vsub.f32 1.0, %v1571
    %v1576 = vld [vmem:[%s16] sm:$0x1]
    %v1578 = vlaneseq
    %v1579 = vshrl.u32 %v1578, 7
    %v1580 = vsub.s32 0, %v1579
    %v1581 = vrot.slane %v1576, %v1580
    %v1583 = vmul.f32 %v1572, %v1581
    %v1584 = vmul.f32 %v1573, %v1581
    %v1585 = vmul.f32 %v1574, %v1581
    %v1586 = vmul.f32 %v1575, %v1581
    %v1587 = vld [vmem:[%s15] sm:$0xff]
    %v1588 = vld [vmem:[%s15 + $0x8] sm:$0xff]
    %v1589 = vld [vmem:[%s15 + $0x10] sm:$0xff]
    %v1590 = vld [vmem:[%s15 + $0x18] sm:$0xff]
    %v1592 = vsel %vm183, %v1583, 0
    %v1595 = vsel %vm183, %v1584, 0
    %v1598 = vsel %vm183, %v1585, 0
    %v1601 = vsel %vm183, %v1586, 0
    %1603 = vmatprep.subr.mxu0 0.0
    %1604 = vmatpush1.msra.mxu0 %v1587
    %1605 = vmatprep.subr.mxu0 0.0
    %1606 = vmatpush1.msra.mxu0 %v1588
    %1607 = vmatprep.subr.mxu0 0.0
    %1608 = vmatpush1.msra.mxu0 %v1589
    %1609 = vmatprep.subr.mxu0 0.0
    %1610 = vmatpush1.msra.mxu0 %v1590
    %1611 = vmatprep.subr.mxu0 0.0
    %1612 = vmatpush1.msra.mxu0 0.0
    %1613 = vmatprep.subr.mxu0 0.0
    %1614 = vmatpush1.msra.mxu0 0.0
    %1615 = vmatprep.subr.mxu0 0.0
    %1616 = vmatpush1.msra.mxu0 0.0
    %1617 = vmatprep.subr.mxu0 0.0
    %1618 = vmatpush1.msra.mxu0 0.0
    %1619 = vmatprep.subr.mxu0 0.0
    %1620 = vmatpush1.msra.mxu0 0.0
    %1621 = vmatprep.subr.mxu0 0.0
    %1622 = vmatpush1.msra.mxu0 0.0
    %1623 = vmatprep.subr.mxu0 0.0
    %1624 = vmatpush1.msra.mxu0 0.0
    %1625 = vmatprep.subr.mxu0 0.0
    %1626 = vmatpush1.msra.mxu0 0.0
    %1627 = vmatprep.subr.mxu0 0.0
    %1628 = vmatpush1.msra.mxu0 0.0
    %1629 = vmatprep.subr.mxu0 0.0
    %1630 = vmatpush1.msra.mxu0 0.0
    %1631 = vmatprep.subr.mxu0 0.0
    %1632 = vmatpush1.msra.mxu0 0.0
    %1633 = vmatprep.subr.mxu0 0.0
    %1634 = vmatpush1.msra.mxu0 0.0
    %1635 = vmatprep.subr.mxu0 0.0
    %1636 = vmatpush1.msra.mxu0 0.0
    %1637 = vmatprep.subr.mxu0 0.0
    %1638 = vmatpush1.msra.mxu0 0.0
    %1639 = vmatprep.subr.mxu0 0.0
    %1640 = vmatpush1.msra.mxu0 0.0
    %1641 = vmatprep.subr.mxu0 0.0
    %1642 = vmatpush1.msra.mxu0 0.0
    %1643 = vmatprep.subr.mxu0 0.0
    %1644 = vmatpush1.msra.mxu0 0.0
    %1645 = vmatprep.subr.mxu0 0.0
    %1646 = vmatpush1.msra.mxu0 0.0
    %1647 = vmatprep.subr.mxu0 0.0
    %1648 = vmatpush1.msra.mxu0 0.0
    %1649 = vmatprep.subr.mxu0 0.0
    %1650 = vmatpush1.msra.mxu0 0.0
    %1651 = vmatprep.subr.mxu0 0.0
    %1652 = vmatpush1.msra.mxu0 0.0
    %1653 = vmatprep.subr.mxu0 0.0
    %1654 = vmatpush1.msra.mxu0 0.0
    %1655 = vmatprep.subr.mxu0 0.0
    %1656 = vmatpush1.msra.mxu0 0.0
    %1657 = vmatprep.subr.mxu0 0.0
    %1658 = vmatpush1.msra.mxu0 0.0
    %1659 = vmatprep.subr.mxu0 0.0
    %1660 = vmatpush1.msra.mxu0 0.0
    %1661 = vmatprep.subr.mxu0 0.0
    %1662 = vmatpush1.msra.mxu0 0.0
    %1663 = vmatprep.subr.mxu0 0.0
    %1664 = vmatpush1.msra.mxu0 0.0
    %1665 = vmatprep.subr.mxu0 0.0
    %1666 = vmatpush1.msra.mxu0 0.0
    %1667 = vmatprep.mubr.f32.mxu0 0.0
    %1668 = vmatmul.mubr.f32.gmra.mrb[0].mxu0 %v1592
    %v1669 = vpop.f32.mrb[0].mxu0
    %v1670 = vadd.f32 0.0, %v1669
    %v1671 = vpop.f32.mrb[0].mxu0
    %1672 = vmatprep.mubr.f32.mxu0 0.0
    %1673 = vmatmul.mubr.f32.gmra.mrb[0].mxu0 %v1595
    %v1674 = vpop.f32.mrb[0].mxu0
    %v1675 = vadd.f32 0.0, %v1674
    %v1676 = vpop.f32.mrb[0].mxu0
    %1677 = vmatprep.mubr.f32.mxu0 0.0
    %1678 = vmatmul.mubr.f32.gmra.mrb[0].mxu0 %v1598
    %v1679 = vpop.f32.mrb[0].mxu0
    %v1680 = vadd.f32 0.0, %v1679
    %v1681 = vpop.f32.mrb[0].mxu0
    %1682 = vmatprep.mubr.f32.mxu0 0.0
    %1683 = vmatmul.mubr.f32.gmra.mrb[0].mxu0 %v1601
    %v1684 = vpop.f32.mrb[0].mxu0
    %v1685 = vadd.f32 0.0, %v1684
    %v1686 = vpop.f32.mrb[0].mxu0
    %1687 = vdwg.mxu0
    %v1688 = vmul.f32 %v1413, %v1413
    %v1689 = vmul.f32 %v1414, %v1414
    %v1690 = vmul.f32 %v1415, %v1415
    %v1691 = vmul.f32 %v1416, %v1416
    %v1692 = vsub.f32 1.0, %v1688
    %v1693 = vsub.f32 1.0, %v1689
    %v1694 = vsub.f32 1.0, %v1690
    %v1695 = vsub.f32 1.0, %v1691
    %v1696 = vmul.f32 %v1670, %v1692
    %v1697 = vmul.f32 %v1675, %v1693
    %v1698 = vmul.f32 %v1680, %v1694
    %v1699 = vmul.f32 %v1685, %v1695
    %v1700 = vld [vmem:[%s14] sm:$0xff]
    %v1701 = vld [vmem:[%s14 + $0x8] sm:$0xff]
    %v1702 = vld [vmem:[%s14 + $0x10] sm:$0xff]
    %v1703 = vld [vmem:[%s14 + $0x18] sm:$0xff]
    %v1705 = vsel %vm183, %v1696, 0
    %v1708 = vsel %vm183, %v1697, 0
    %v1711 = vsel %vm183, %v1698, 0
    %v1714 = vsel %vm183, %v1699, 0
    %1716 = vmatprep.subr.mxu0 0.0
    %1717 = vmatpush1.msra.mxu0 %v1700
    %1718 = vmatprep.subr.mxu0 0.0
    %1719 = vmatpush1.msra.mxu0 %v1701
    %1720 = vmatprep.subr.mxu0 0.0
    %1721 = vmatpush1.msra.mxu0 %v1702
    %1722 = vmatprep.subr.mxu0 0.0
    %1723 = vmatpush1.msra.mxu0 %v1703
    %1724 = vmatprep.subr.mxu0 0.0
    %1725 = vmatpush1.msra.mxu0 0.0
    %1726 = vmatprep.subr.mxu0 0.0
    %1727 = vmatpush1.msra.mxu0 0.0
    %1728 = vmatprep.subr.mxu0 0.0
    %1729 = vmatpush1.msra.mxu0 0.0
    %1730 = vmatprep.subr.mxu0 0.0
    %1731 = vmatpush1.msra.mxu0 0.0
    %1732 = vmatprep.subr.mxu0 0.0
    %1733 = vmatpush1.msra.mxu0 0.0
    %1734 = vmatprep.subr.mxu0 0.0
    %1735 = vmatpush1.msra.mxu0 0.0
    %1736 = vmatprep.subr.mxu0 0.0
    %1737 = vmatpush1.msra.mxu0 0.0
    %1738 = vmatprep.subr.mxu0 0.0
    %1739 = vmatpush1.msra.mxu0 0.0
    %1740 = vmatprep.subr.mxu0 0.0
    %1741 = vmatpush1.msra.mxu0 0.0
    %1742 = vmatprep.subr.mxu0 0.0
    %1743 = vmatpush1.msra.mxu0 0.0
    %1744 = vmatprep.subr.mxu0 0.0
    %1745 = vmatpush1.msra.mxu0 0.0
    %1746 = vmatprep.subr.mxu0 0.0
    %1747 = vmatpush1.msra.mxu0 0.0
    %1748 = vmatprep.subr.mxu0 0.0
    %1749 = vmatpush1.msra.mxu0 0.0
    %1750 = vmatprep.subr.mxu0 0.0
    %1751 = vmatpush1.msra.mxu0 0.0
    %1752 = vmatprep.subr.mxu0 0.0
    %1753 = vmatpush1.msra.mxu0 0.0
    %1754 = vmatprep.subr.mxu0 0.0
    %1755 = vmatpush1.msra.mxu0 0.0
    %1756 = vmatprep.subr.mxu0 0.0
    %1757 = vmatpush1.msra.mxu0 0.0
    %1758 = vmatprep.subr.mxu0 0.0
    %1759 = vmatpush1.msra.mxu0 0.0
    %1760 = vmatprep.subr.mxu0 0.0
    %1761 = vmatpush1.msra.mxu0 0.0
    %1762 = vmatprep.subr.mxu0 0.0
    %1763 = vmatpush1.msra.mxu0 0.0
    %1764 = vmatprep.subr.mxu0 0.0
    %1765 = vmatpush1.msra.mxu0 0.0
    %1766 = vmatprep.subr.mxu0 0.0
    %1767 = vmatpush1.msra.mxu0 0.0
    %1768 = vmatprep.subr.mxu0 0.0
    %1769 = vmatpush1.msra.mxu0 0.0
    %1770 = vmatprep.subr.mxu0 0.0
    %1771 = vmatpush1.msra.mxu0 0.0
    %1772 = vmatprep.subr.mxu0 0.0
    %1773 = vmatpush1.msra.mxu0 0.0
    %1774 = vmatprep.subr.mxu0 0.0
    %1775 = vmatpush1.msra.mxu0 0.0
    %1776 = vmatprep.subr.mxu0 0.0
    %1777 = vmatpush1.msra.mxu0 0.0
    %1778 = vmatprep.subr.mxu0 0.0
    %1779 = vmatpush1.msra.mxu0 0.0
    %1780 = vmatprep.mubr.f32.mxu0 0.0
    %1781 = vmatmul.mubr.f32.gmra.mrb[0].mxu0 %v1705
    %v1782 = vpop.f32.mrb[0].mxu0
    %v1783 = vadd.f32 0.0, %v1782
    %v1784 = vpop.f32.mrb[0].mxu0
    %1785 = vmatprep.mubr.f32.mxu0 0.0
    %1786 = vmatmul.mubr.f32.gmra.mrb[0].mxu0 %v1708
    %v1787 = vpop.f32.mrb[0].mxu0
    %v1788 = vadd.f32 0.0, %v1787
    %v1789 = vpop.f32.mrb[0].mxu0
    %1790 = vmatprep.mubr.f32.mxu0 0.0
    %1791 = vmatmul.mubr.f32.gmra.mrb[0].mxu0 %v1711
    %v1792 = vpop.f32.mrb[0].mxu0
    %v1793 = vadd.f32 0.0, %v1792
    %v1794 = vpop.f32.mrb[0].mxu0
    %1795 = vmatprep.mubr.f32.mxu0 0.0
    %1796 = vmatmul.mubr.f32.gmra.mrb[0].mxu0 %v1714
    %v1797 = vpop.f32.mrb[0].mxu0
    %v1798 = vadd.f32 0.0, %v1797
    %v1799 = vpop.f32.mrb[0].mxu0
    %1800 = vdwg.mxu0
    %v1801 = vmul.f32 %v1783, 0.125
    %v1802 = vmul.f32 %v1788, 0.125
    %v1803 = vmul.f32 %v1793, 0.125
    %v1804 = vmul.f32 %v1798, 0.125
    %v1805 = vld [vmem:[#allocation9] sm:$0xff]
    %v1806 = vld [vmem:[#allocation9 + $0x8] sm:$0xff]
    %v1808 = vsel %vm1242, %v1801, 0
    %v1811 = vsel %vm1242, %v1802, 0
    %v1814 = vsel %vm1242, %v1803, 0
    %v1817 = vsel %vm1242, %v1804, 0
    %1819 = vmatprep.subr.mxu0 0.0
    %1820 = vmatpush1.msra.mxu0 %v1805
    %1821 = vmatprep.subr.mxu0 0.0
    %1822 = vmatpush1.msra.mxu0 %v1806
    %1823 = vmatprep.subr.mxu0 0.0
    %1824 = vmatpush1.msra.mxu0 0.0
    %1825 = vmatprep.subr.mxu0 0.0
    %1826 = vmatpush1.msra.mxu0 0.0
    %1827 = vmatprep.subr.mxu0 0.0
    %1828 = vmatpush1.msra.mxu0 0.0
    %1829 = vmatprep.subr.mxu0 0.0
    %1830 = vmatpush1.msra.mxu0 0.0
    %1831 = vmatprep.subr.mxu0 0.0
    %1832 = vmatpush1.msra.mxu0 0.0
    %1833 = vmatprep.subr.mxu0 0.0
    %1834 = vmatpush1.msra.mxu0 0.0
    %1835 = vmatprep.subr.mxu0 0.0
    %1836 = vmatpush1.msra.mxu0 0.0
    %1837 = vmatprep.subr.mxu0 0.0
    %1838 = vmatpush1.msra.mxu0 0.0
    %1839 = vmatprep.subr.mxu0 0.0
    %1840 = vmatpush1.msra.mxu0 0.0
    %1841 = vmatprep.subr.mxu0 0.0
    %1842 = vmatpush1.msra.mxu0 0.0
    %1843 = vmatprep.subr.mxu0 0.0
    %1844 = vmatpush1.msra.mxu0 0.0
    %1845 = vmatprep.subr.mxu0 0.0
    %1846 = vmatpush1.msra.mxu0 0.0
    %1847 = vmatprep.subr.mxu0 0.0
    %1848 = vmatpush1.msra.mxu0 0.0
    %1849 = vmatprep.subr.mxu0 0.0
    %1850 = vmatpush1.msra.mxu0 0.0
    %1851 = vmatprep.subr.mxu0 0.0
    %1852 = vmatpush1.msra.mxu0 0.0
    %1853 = vmatprep.subr.mxu0 0.0
    %1854 = vmatpush1.msra.mxu0 0.0
    %1855 = vmatprep.subr.mxu0 0.0
    %1856 = vmatpush1.msra.mxu0 0.0
    %1857 = vmatprep.subr.mxu0 0.0
    %1858 = vmatpush1.msra.mxu0 0.0
    %1859 = vmatprep.subr.mxu0 0.0
    %1860 = vmatpush1.msra.mxu0 0.0
    %1861 = vmatprep.subr.mxu0 0.0
    %1862 = vmatpush1.msra.mxu0 0.0
    %1863 = vmatprep.subr.mxu0 0.0
    %1864 = vmatpush1.msra.mxu0 0.0
    %1865 = vmatprep.subr.mxu0 0.0
    %1866 = vmatpush1.msra.mxu0 0.0
    %1867 = vmatprep.subr.mxu0 0.0
    %1868 = vmatpush1.msra.mxu0 0.0
    %1869 = vmatprep.subr.mxu0 0.0
    %1870 = vmatpush1.msra.mxu0 0.0
    %1871 = vmatprep.subr.mxu0 0.0
    %1872 = vmatpush1.msra.mxu0 0.0
    %1873 = vmatprep.subr.mxu0 0.0
    %1874 = vmatpush1.msra.mxu0 0.0
    %1875 = vmatprep.subr.mxu0 0.0
    %1876 = vmatpush1.msra.mxu0 0.0
    %1877 = vmatprep.subr.mxu0 0.0
    %1878 = vmatpush1.msra.mxu0 0.0
    %1879 = vmatprep.subr.mxu0 0.0
    %1880 = vmatpush1.msra.mxu0 0.0
    %1881 = vmatprep.subr.mxu0 0.0
    %1882 = vmatpush1.msra.mxu0 0.0
    %1883 = vmatprep.mubr.f32.mxu0 0.0
    %1884 = vmatmul.mubr.f32.gmra.mrb[0].mxu0 %v1808
    %v1885 = vpop.f32.mrb[0].mxu0
    %v1886 = vadd.f32 0.0, %v1885
    %v1887 = vpop.f32.mrb[0].mxu0
    %1888 = vmatprep.mubr.f32.mxu0 0.0
    %1889 = vmatmul.mubr.f32.gmra.mrb[0].mxu0 %v1811
    %v1890 = vpop.f32.mrb[0].mxu0
    %v1891 = vadd.f32 0.0, %v1890
    %v1892 = vpop.f32.mrb[0].mxu0
    %1893 = vmatprep.mubr.f32.mxu0 0.0
    %1894 = vmatmul.mubr.f32.gmra.mrb[0].mxu0 %v1814
    %v1895 = vpop.f32.mrb[0].mxu0
    %v1896 = vadd.f32 0.0, %v1895
    %v1897 = vpop.f32.mrb[0].mxu0
    %1898 = vmatprep.mubr.f32.mxu0 0.0
    %1899 = vmatmul.mubr.f32.gmra.mrb[0].mxu0 %v1817
    %v1900 = vpop.f32.mrb[0].mxu0
    %v1901 = vadd.f32 0.0, %v1900
    %v1902 = vpop.f32.mrb[0].mxu0
    %1903 = vdwg.mxu0
    %v1904 = vmul.f32 %v874, %v874
    %v1905 = vmul.f32 %v875, %v875
    %v1906 = vmul.f32 %v876, %v876
    %v1907 = vmul.f32 %v877, %v877
    %v1908 = vmul.f32 %v878, %v878
    %v1909 = vmul.f32 %v879, %v879
    %v1910 = vmul.f32 %v880, %v880
    %v1911 = vmul.f32 %v881, %v881
    %v1912 = vmul.f32 %v882, %v882
    %v1913 = vmul.f32 %v883, %v883
    %v1914 = vmul.f32 %v884, %v884
    %v1915 = vmul.f32 %v885, %v885
    %v1916 = vmul.f32 %v886, %v886
    %v1917 = vmul.f32 %v887, %v887
    %v1918 = vmul.f32 %v888, %v888
    %v1919 = vmul.f32 %v889, %v889
    %v1920 = vmul.f32 %v890, %v890
    %v1921 = vmul.f32 %v891, %v891
    %v1922 = vmul.f32 %v892, %v892
    %v1923 = vmul.f32 %v893, %v893
    %v1924 = vmul.f32 %v894, %v894
    %v1925 = vmul.f32 %v895, %v895
    %v1926 = vmul.f32 %v896, %v896
    %v1927 = vmul.f32 %v897, %v897
    %v1928 = vmul.f32 %v898, %v898
    %v1929 = vmul.f32 %v899, %v899
    %v1930 = vmul.f32 %v900, %v900
    %v1931 = vmul.f32 %v901, %v901
    %v1932 = vmul.f32 %v902, %v902
    %v1933 = vmul.f32 %v903, %v903
    %v1934 = vmul.f32 %v904, %v904
    %v1935 = vmul.f32 %v905, %v905
    %v1936 = vsub.f32 1.0, %v1904
    %v1937 = vsub.f32 1.0, %v1905
    %v1938 = vsub.f32 1.0, %v1906
    %v1939 = vsub.f32 1.0, %v1907
    %v1940 = vsub.f32 1.0, %v1908
    %v1941 = vsub.f32 1.0, %v1909
    %v1942 = vsub.f32 1.0, %v1910
    %v1943 = vsub.f32 1.0, %v1911
    %v1944 = vsub.f32 1.0, %v1912
    %v1945 = vsub.f32 1.0, %v1913
    %v1946 = vsub.f32 1.0, %v1914
    %v1947 = vsub.f32 1.0, %v1915
    %v1948 = vsub.f32 1.0, %v1916
    %v1949 = vsub.f32 1.0, %v1917
    %v1950 = vsub.f32 1.0, %v1918
    %v1951 = vsub.f32 1.0, %v1919
    %v1952 = vsub.f32 1.0, %v1920
    %v1953 = vsub.f32 1.0, %v1921
    %v1954 = vsub.f32 1.0, %v1922
    %v1955 = vsub.f32 1.0, %v1923
    %v1956 = vsub.f32 1.0, %v1924
    %v1957 = vsub.f32 1.0, %v1925
    %v1958 = vsub.f32 1.0, %v1926
    %v1959 = vsub.f32 1.0, %v1927
    %v1960 = vsub.f32 1.0, %v1928
    %v1961 = vsub.f32 1.0, %v1929
    %v1962 = vsub.f32 1.0, %v1930
    %v1963 = vsub.f32 1.0, %v1931
    %v1964 = vsub.f32 1.0, %v1932
    %v1965 = vsub.f32 1.0, %v1933
    %v1966 = vsub.f32 1.0, %v1934
    %v1967 = vsub.f32 1.0, %v1935
    %v1968 = vmul.f32 %v1886, %v1936
    %v1969 = vmul.f32 %v1891, %v1937
    %v1970 = vmul.f32 %v1896, %v1938
    %v1971 = vmul.f32 %v1901, %v1939
    %v1972 = vmul.f32 %v1886, %v1940
    %v1973 = vmul.f32 %v1891, %v1941
    %v1974 = vmul.f32 %v1896, %v1942
    %v1975 = vmul.f32 %v1901, %v1943
    %v1976 = vmul.f32 %v1886, %v1944
    %v1977 = vmul.f32 %v1891, %v1945
    %v1978 = vmul.f32 %v1896, %v1946
    %v1979 = vmul.f32 %v1901, %v1947
    %v1980 = vmul.f32 %v1886, %v1948
    %v1981 = vmul.f32 %v1891, %v1949
    %v1982 = vmul.f32 %v1896, %v1950
    %v1983 = vmul.f32 %v1901, %v1951
    %v1984 = vmul.f32 %v1886, %v1952
    %v1985 = vmul.f32 %v1891, %v1953
    %v1986 = vmul.f32 %v1896, %v1954
    %v1987 = vmul.f32 %v1901, %v1955
    %v1988 = vmul.f32 %v1886, %v1956
    %v1989 = vmul.f32 %v1891, %v1957
    %v1990 = vmul.f32 %v1896, %v1958
    %v1991 = vmul.f32 %v1901, %v1959
    %v1992 = vmul.f32 %v1886, %v1960
    %v1993 = vmul.f32 %v1891, %v1961
    %v1994 = vmul.f32 %v1896, %v1962
    %v1995 = vmul.f32 %v1901, %v1963
    %v1996 = vmul.f32 %v1886, %v1964
    %v1997 = vmul.f32 %v1891, %v1965
    %v1998 = vmul.f32 %v1896, %v1966
    %v1999 = vmul.f32 %v1901, %v1967
    %v2000 = vld [vmem:[%s8] sm:$0xff]
    %v2001 = vld [vmem:[%s8 + $0x8] sm:$0xff]
    %v2002 = vld [vmem:[%s8 + $0x10] sm:$0xff]
    %v2003 = vld [vmem:[%s8 + $0x18] sm:$0xff]
    %v2004 = vld [vmem:[%s8 + $0x20] sm:$0xff]
    %v2005 = vld [vmem:[%s8 + $0x28] sm:$0xff]
    %v2006 = vld [vmem:[%s8 + $0x30] sm:$0xff]
    %v2007 = vld [vmem:[%s8 + $0x38] sm:$0xff]
    %v2009 = vsel %vm552, %v1968, 0
    %v2012 = vsel %vm552, %v1969, 0
    %v2015 = vsel %vm552, %v1970, 0
    %v2018 = vsel %vm552, %v1971, 0
    %v2021 = vsel %vm552, %v1972, 0
    %v2024 = vsel %vm552, %v1973, 0
    %v2027 = vsel %vm552, %v1974, 0
    %v2030 = vsel %vm552, %v1975, 0
    %v2033 = vsel %vm552, %v1976, 0
    %v2036 = vsel %vm552, %v1977, 0
    %v2039 = vsel %vm552, %v1978, 0
    %v2042 = vsel %vm552, %v1979, 0
    %v2045 = vsel %vm552, %v1980, 0
    %v2048 = vsel %vm552, %v1981, 0
    %v2051 = vsel %vm552, %v1982, 0
    %v2054 = vsel %vm552, %v1983, 0
    %v2057 = vsel %vm552, %v1984, 0
    %v2060 = vsel %vm552, %v1985, 0
    %v2063 = vsel %vm552, %v1986, 0
    %v2066 = vsel %vm552, %v1987, 0
    %v2069 = vsel %vm552, %v1988, 0
    %v2072 = vsel %vm552, %v1989, 0
    %v2075 = vsel %vm552, %v1990, 0
    %v2078 = vsel %vm552, %v1991, 0
    %v2081 = vsel %vm552, %v1992, 0
    %v2084 = vsel %vm552, %v1993, 0
    %v2087 = vsel %vm552, %v1994, 0
    %v2090 = vsel %vm552, %v1995, 0
    %v2093 = vsel %vm552, %v1996, 0
    %v2096 = vsel %vm552, %v1997, 0
    %v2099 = vsel %vm552, %v1998, 0
    %v2102 = vsel %vm552, %v1999, 0
    %2104 = vmatprep.subr.mxu0 0.0
    %2105 = vmatpush1.msra.mxu0 %v2000
    %2106 = vmatprep.subr.mxu0 0.0
    %2107 = vmatpush1.msra.mxu0 %v2001
    %2108 = vmatprep.subr.mxu0 0.0
    %2109 = vmatpush1.msra.mxu0 %v2002
    %2110 = vmatprep.subr.mxu0 0.0
    %2111 = vmatpush1.msra.mxu0 %v2003
    %2112 = vmatprep.subr.mxu0 0.0
    %2113 = vmatpush1.msra.mxu0 %v2004
    %2114 = vmatprep.subr.mxu0 0.0
    %2115 = vmatpush1.msra.mxu0 %v2005
    %2116 = vmatprep.subr.mxu0 0.0
    %2117 = vmatpush1.msra.mxu0 %v2006
    %2118 = vmatprep.subr.mxu0 0.0
    %2119 = vmatpush1.msra.mxu0 %v2007
    %2120 = vmatprep.subr.mxu0 0.0
    %2121 = vmatpush1.msra.mxu0 0.0
    %2122 = vmatprep.subr.mxu0 0.0
    %2123 = vmatpush1.msra.mxu0 0.0
    %2124 = vmatprep.subr.mxu0 0.0
    %2125 = vmatpush1.msra.mxu0 0.0
    %2126 = vmatprep.subr.mxu0 0.0
    %2127 = vmatpush1.msra.mxu0 0.0
    %2128 = vmatprep.subr.mxu0 0.0
    %2129 = vmatpush1.msra.mxu0 0.0
    %2130 = vmatprep.subr.mxu0 0.0
    %2131 = vmatpush1.msra.mxu0 0.0
    %2132 = vmatprep.subr.mxu0 0.0
    %2133 = vmatpush1.msra.mxu0 0.0
    %2134 = vmatprep.subr.mxu0 0.0
    %2135 = vmatpush1.msra.mxu0 0.0
    %2136 = vmatprep.subr.mxu0 0.0
    %2137 = vmatpush1.msra.mxu0 0.0
    %2138 = vmatprep.subr.mxu0 0.0
    %2139 = vmatpush1.msra.mxu0 0.0
    %2140 = vmatprep.subr.mxu0 0.0
    %2141 = vmatpush1.msra.mxu0 0.0
    %2142 = vmatprep.subr.mxu0 0.0
    %2143 = vmatpush1.msra.mxu0 0.0
    %2144 = vmatprep.subr.mxu0 0.0
    %2145 = vmatpush1.msra.mxu0 0.0
    %2146 = vmatprep.subr.mxu0 0.0
    %2147 = vmatpush1.msra.mxu0 0.0
    %2148 = vmatprep.subr.mxu0 0.0
    %2149 = vmatpush1.msra.mxu0 0.0
    %2150 = vmatprep.subr.mxu0 0.0
    %2151 = vmatpush1.msra.mxu0 0.0
    %2152 = vmatprep.subr.mxu0 0.0
    %2153 = vmatpush1.msra.mxu0 0.0
    %2154 = vmatprep.subr.mxu0 0.0
    %2155 = vmatpush1.msra.mxu0 0.0
    %2156 = vmatprep.subr.mxu0 0.0
    %2157 = vmatpush1.msra.mxu0 0.0
    %2158 = vmatprep.subr.mxu0 0.0
    %2159 = vmatpush1.msra.mxu0 0.0
    %2160 = vmatprep.subr.mxu0 0.0
    %2161 = vmatpush1.msra.mxu0 0.0
    %2162 = vmatprep.subr.mxu0 0.0
    %2163 = vmatpush1.msra.mxu0 0.0
    %2164 = vmatprep.subr.mxu0 0.0
    %2165 = vmatpush1.msra.mxu0 0.0
    %2166 = vmatprep.subr.mxu0 0.0
    %2167 = vmatpush1.msra.mxu0 0.0
    %2168 = vmatprep.mubr.f32.mxu0 0.0
    %2169 = vmatmul.mubr.f32.gmra.mrb[0].mxu0 %v2009
    %v2170 = vpop.f32.mrb[0].mxu0
    %v2171 = vadd.f32 0.0, %v2170
    %v2172 = vpop.f32.mrb[0].mxu0
    %2173 = vmatprep.mubr.f32.mxu0 0.0
    %2174 = vmatmul.mubr.f32.gmra.mrb[0].mxu0 %v2012
    %v2175 = vpop.f32.mrb[0].mxu0
    %v2176 = vadd.f32 0.0, %v2175
    %v2177 = vpop.f32.mrb[0].mxu0
    %2178 = vmatprep.mubr.f32.mxu0 0.0
    %2179 = vmatmul.mubr.f32.gmra.mrb[0].mxu0 %v2015
    %v2180 = vpop.f32.mrb[0].mxu0
    %v2181 = vadd.f32 0.0, %v2180
    %v2182 = vpop.f32.mrb[0].mxu0
    %2183 = vmatprep.mubr.f32.mxu0 0.0
    %2184 = vmatmul.mubr.f32.gmra.mrb[0].mxu0 %v2018
    %v2185 = vpop.f32.mrb[0].mxu0
    %v2186 = vadd.f32 0.0, %v2185
    %v2187 = vpop.f32.mrb[0].mxu0
    %2188 = vmatprep.mubr.f32.mxu0 0.0
    %2189 = vmatmul.mubr.f32.gmra.mrb[0].mxu0 %v2021
    %v2190 = vpop.f32.mrb[0].mxu0
    %v2191 = vadd.f32 0.0, %v2190
    %v2192 = vpop.f32.mrb[0].mxu0
    %2193 = vmatprep.mubr.f32.mxu0 0.0
    %2194 = vmatmul.mubr.f32.gmra.mrb[0].mxu0 %v2024
    %v2195 = vpop.f32.mrb[0].mxu0
    %v2196 = vadd.f32 0.0, %v2195
    %v2197 = vpop.f32.mrb[0].mxu0
    %2198 = vmatprep.mubr.f32.mxu0 0.0
    %2199 = vmatmul.mubr.f32.gmra.mrb[0].mxu0 %v2027
    %v2200 = vpop.f32.mrb[0].mxu0
    %v2201 = vadd.f32 0.0, %v2200
    %v2202 = vpop.f32.mrb[0].mxu0
    %2203 = vmatprep.mubr.f32.mxu0 0.0
    %2204 = vmatmul.mubr.f32.gmra.mrb[0].mxu0 %v2030
    %v2205 = vpop.f32.mrb[0].mxu0
    %v2206 = vadd.f32 0.0, %v2205
    %v2207 = vpop.f32.mrb[0].mxu0
    %2208 = vmatprep.mubr.f32.mxu0 0.0
    %2209 = vmatmul.mubr.f32.gmra.mrb[0].mxu0 %v2033
    %v2210 = vpop.f32.mrb[0].mxu0
    %v2211 = vadd.f32 0.0, %v2210
    %v2212 = vpop.f32.mrb[0].mxu0
    %2213 = vmatprep.mubr.f32.mxu0 0.0
    %2214 = vmatmul.mubr.f32.gmra.mrb[0].mxu0 %v2036
    %v2215 = vpop.f32.mrb[0].mxu0
    %v2216 = vadd.f32 0.0, %v2215
    %v2217 = vpop.f32.mrb[0].mxu0
    %2218 = vmatprep.mubr.f32.mxu0 0.0
    %2219 = vmatmul.mubr.f32.gmra.mrb[0].mxu0 %v2039
    %v2220 = vpop.f32.mrb[0].mxu0
    %v2221 = vadd.f32 0.0, %v2220
    %v2222 = vpop.f32.mrb[0].mxu0
    %2223 = vmatprep.mubr.f32.mxu0 0.0
    %2224 = vmatmul.mubr.f32.gmra.mrb[0].mxu0 %v2042
    %v2225 = vpop.f32.mrb[0].mxu0
    %v2226 = vadd.f32 0.0, %v2225
    %v2227 = vpop.f32.mrb[0].mxu0
    %2228 = vmatprep.mubr.f32.mxu0 0.0
    %2229 = vmatmul.mubr.f32.gmra.mrb[0].mxu0 %v2045
    %v2230 = vpop.f32.mrb[0].mxu0
    %v2231 = vadd.f32 0.0, %v2230
    %v2232 = vpop.f32.mrb[0].mxu0
    %2233 = vmatprep.mubr.f32.mxu0 0.0
    %2234 = vmatmul.mubr.f32.gmra.mrb[0].mxu0 %v2048
    %v2235 = vpop.f32.mrb[0].mxu0
    %v2236 = vadd.f32 0.0, %v2235
    %v2237 = vpop.f32.mrb[0].mxu0
    %2238 = vmatprep.mubr.f32.mxu0 0.0
    %2239 = vmatmul.mubr.f32.gmra.mrb[0].mxu0 %v2051
    %v2240 = vpop.f32.mrb[0].mxu0
    %v2241 = vadd.f32 0.0, %v2240
    %v2242 = vpop.f32.mrb[0].mxu0
    %2243 = vmatprep.mubr.f32.mxu0 0.0
    %2244 = vmatmul.mubr.f32.gmra.mrb[0].mxu0 %v2054
    %v2245 = vpop.f32.mrb[0].mxu0
    %v2246 = vadd.f32 0.0, %v2245
    %v2247 = vpop.f32.mrb[0].mxu0
    %2248 = vmatprep.mubr.f32.mxu0 0.0
    %2249 = vmatmul.mubr.f32.gmra.mrb[0].mxu0 %v2057
    %v2250 = vpop.f32.mrb[0].mxu0
    %v2251 = vadd.f32 0.0, %v2250
    %v2252 = vpop.f32.mrb[0].mxu0
    %2253 = vmatprep.mubr.f32.mxu0 0.0
    %2254 = vmatmul.mubr.f32.gmra.mrb[0].mxu0 %v2060
    %v2255 = vpop.f32.mrb[0].mxu0
    %v2256 = vadd.f32 0.0, %v2255
    %v2257 = vpop.f32.mrb[0].mxu0
    %2258 = vmatprep.mubr.f32.mxu0 0.0
    %2259 = vmatmul.mubr.f32.gmra.mrb[0].mxu0 %v2063
    %v2260 = vpop.f32.mrb[0].mxu0
    %v2261 = vadd.f32 0.0, %v2260
    %v2262 = vpop.f32.mrb[0].mxu0
    %2263 = vmatprep.mubr.f32.mxu0 0.0
    %2264 = vmatmul.mubr.f32.gmra.mrb[0].mxu0 %v2066
    %v2265 = vpop.f32.mrb[0].mxu0
    %v2266 = vadd.f32 0.0, %v2265
    %v2267 = vpop.f32.mrb[0].mxu0
    %2268 = vmatprep.mubr.f32.mxu0 0.0
    %2269 = vmatmul.mubr.f32.gmra.mrb[0].mxu0 %v2069
    %v2270 = vpop.f32.mrb[0].mxu0
    %v2271 = vadd.f32 0.0, %v2270
    %v2272 = vpop.f32.mrb[0].mxu0
    %2273 = vmatprep.mubr.f32.mxu0 0.0
    %2274 = vmatmul.mubr.f32.gmra.mrb[0].mxu0 %v2072
    %v2275 = vpop.f32.mrb[0].mxu0
    %v2276 = vadd.f32 0.0, %v2275
    %v2277 = vpop.f32.mrb[0].mxu0
    %2278 = vmatprep.mubr.f32.mxu0 0.0
    %2279 = vmatmul.mubr.f32.gmra.mrb[0].mxu0 %v2075
    %v2280 = vpop.f32.mrb[0].mxu0
    %v2281 = vadd.f32 0.0, %v2280
    %v2282 = vpop.f32.mrb[0].mxu0
    %2283 = vmatprep.mubr.f32.mxu0 0.0
    %2284 = vmatmul.mubr.f32.gmra.mrb[0].mxu0 %v2078
    %v2285 = vpop.f32.mrb[0].mxu0
    %v2286 = vadd.f32 0.0, %v2285
    %v2287 = vpop.f32.mrb[0].mxu0
    %2288 = vmatprep.mubr.f32.mxu0 0.0
    %2289 = vmatmul.mubr.f32.gmra.mrb[0].mxu0 %v2081
    %v2290 = vpop.f32.mrb[0].mxu0
    %v2291 = vadd.f32 0.0, %v2290
    %v2292 = vpop.f32.mrb[0].mxu0
    %2293 = vmatprep.mubr.f32.mxu0 0.0
    %2294 = vmatmul.mubr.f32.gmra.mrb[0].mxu0 %v2084
    %v2295 = vpop.f32.mrb[0].mxu0
    %v2296 = vadd.f32 0.0, %v2295
    %v2297 = vpop.f32.mrb[0].mxu0
    %2298 = vmatprep.mubr.f32.mxu0 0.0
    %2299 = vmatmul.mubr.f32.gmra.mrb[0].mxu0 %v2087
    %v2300 = vpop.f32.mrb[0].mxu0
    %v2301 = vadd.f32 0.0, %v2300
    %v2302 = vpop.f32.mrb[0].mxu0
    %2303 = vmatprep.mubr.f32.mxu0 0.0
    %2304 = vmatmul.mubr.f32.gmra.mrb[0].mxu0 %v2090
    %v2305 = vpop.f32.mrb[0].mxu0
    %v2306 = vadd.f32 0.0, %v2305
    %v2307 = vpop.f32.mrb[0].mxu0
    %2308 = vmatprep.mubr.f32.mxu0 0.0
    %2309 = vmatmul.mubr.f32.gmra.mrb[0].mxu0 %v2093
    %v2310 = vpop.f32.mrb[0].mxu0
    %v2311 = vadd.f32 0.0, %v2310
    %v2312 = vpop.f32.mrb[0].mxu0
    %2313 = vmatprep.mubr.f32.mxu0 0.0
    %2314 = vmatmul.mubr.f32.gmra.mrb[0].mxu0 %v2096
    %v2315 = vpop.f32.mrb[0].mxu0
    %v2316 = vadd.f32 0.0, %v2315
    %v2317 = vpop.f32.mrb[0].mxu0
    %2318 = vmatprep.mubr.f32.mxu0 0.0
    %2319 = vmatmul.mubr.f32.gmra.mrb[0].mxu0 %v2099
    %v2320 = vpop.f32.mrb[0].mxu0
    %v2321 = vadd.f32 0.0, %v2320
    %v2322 = vpop.f32.mrb[0].mxu0
    %2323 = vmatprep.mubr.f32.mxu0 0.0
    %2324 = vmatmul.mubr.f32.gmra.mrb[0].mxu0 %v2102
    %v2325 = vpop.f32.mrb[0].mxu0
    %v2326 = vadd.f32 0.0, %v2325
    %v2327 = vpop.f32.mrb[0].mxu0
    %2328 = vdwg.mxu0
    %v2329 = vmul.f32 %v505, %v505
    %v2330 = vmul.f32 %v506, %v506
    %v2331 = vmul.f32 %v507, %v507
    %v2332 = vmul.f32 %v508, %v508
    %v2333 = vmul.f32 %v509, %v509
    %v2334 = vmul.f32 %v510, %v510
    %v2335 = vmul.f32 %v511, %v511
    %v2336 = vmul.f32 %v512, %v512
    %v2337 = vmul.f32 %v513, %v513
    %v2338 = vmul.f32 %v514, %v514
    %v2339 = vmul.f32 %v515, %v515
    %v2340 = vmul.f32 %v516, %v516
    %v2341 = vmul.f32 %v517, %v517
    %v2342 = vmul.f32 %v518, %v518
    %v2343 = vmul.f32 %v519, %v519
    %v2344 = vmul.f32 %v520, %v520
    %v2345 = vmul.f32 %v521, %v521
    %v2346 = vmul.f32 %v522, %v522
    %v2347 = vmul.f32 %v523, %v523
    %v2348 = vmul.f32 %v524, %v524
    %v2349 = vmul.f32 %v525, %v525
    %v2350 = vmul.f32 %v526, %v526
    %v2351 = vmul.f32 %v527, %v527
    %v2352 = vmul.f32 %v528, %v528
    %v2353 = vmul.f32 %v529, %v529
    %v2354 = vmul.f32 %v530, %v530
    %v2355 = vmul.f32 %v531, %v531
    %v2356 = vmul.f32 %v532, %v532
    %v2357 = vmul.f32 %v533, %v533
    %v2358 = vmul.f32 %v534, %v534
    %v2359 = vmul.f32 %v535, %v535
    %v2360 = vmul.f32 %v536, %v536
    %v2361 = vsub.f32 1.0, %v2329
    %v2362 = vsub.f32 1.0, %v2330
    %v2363 = vsub.f32 1.0, %v2331
    %v2364 = vsub.f32 1.0, %v2332
    %v2365 = vsub.f32 1.0, %v2333
    %v2366 = vsub.f32 1.0, %v2334
    %v2367 = vsub.f32 1.0, %v2335
    %v2368 = vsub.f32 1.0, %v2336
    %v2369 = vsub.f32 1.0, %v2337
    %v2370 = vsub.f32 1.0, %v2338
    %v2371 = vsub.f32 1.0, %v2339
    %v2372 = vsub.f32 1.0, %v2340
    %v2373 = vsub.f32 1.0, %v2341
    %v2374 = vsub.f32 1.0, %v2342
    %v2375 = vsub.f32 1.0, %v2343
    %v2376 = vsub.f32 1.0, %v2344
    %v2377 = vsub.f32 1.0, %v2345
    %v2378 = vsub.f32 1.0, %v2346
    %v2379 = vsub.f32 1.0, %v2347
    %v2380 = vsub.f32 1.0, %v2348
    %v2381 = vsub.f32 1.0, %v2349
    %v2382 = vsub.f32 1.0, %v2350
    %v2383 = vsub.f32 1.0, %v2351
    %v2384 = vsub.f32 1.0, %v2352
    %v2385 = vsub.f32 1.0, %v2353
    %v2386 = vsub.f32 1.0, %v2354
    %v2387 = vsub.f32 1.0, %v2355
    %v2388 = vsub.f32 1.0, %v2356
    %v2389 = vsub.f32 1.0, %v2357
    %v2390 = vsub.f32 1.0, %v2358
    %v2391 = vsub.f32 1.0, %v2359
    %v2392 = vsub.f32 1.0, %v2360
    %v2393 = vmul.f32 %v2171, %v2361
    %v2394 = vmul.f32 %v2176, %v2362
    %v2395 = vmul.f32 %v2181, %v2363
    %v2396 = vmul.f32 %v2186, %v2364
    %v2397 = vmul.f32 %v2191, %v2365
    %v2398 = vmul.f32 %v2196, %v2366
    %v2399 = vmul.f32 %v2201, %v2367
    %v2400 = vmul.f32 %v2206, %v2368
    %v2401 = vmul.f32 %v2211, %v2369
    %v2402 = vmul.f32 %v2216, %v2370
    %v2403 = vmul.f32 %v2221, %v2371
    %v2404 = vmul.f32 %v2226, %v2372
    %v2405 = vmul.f32 %v2231, %v2373
    %v2406 = vmul.f32 %v2236, %v2374
    %v2407 = vmul.f32 %v2241, %v2375
    %v2408 = vmul.f32 %v2246, %v2376
    %v2409 = vmul.f32 %v2251, %v2377
    %v2410 = vmul.f32 %v2256, %v2378
    %v2411 = vmul.f32 %v2261, %v2379
    %v2412 = vmul.f32 %v2266, %v2380
    %v2413 = vmul.f32 %v2271, %v2381
    %v2414 = vmul.f32 %v2276, %v2382
    %v2415 = vmul.f32 %v2281, %v2383
    %v2416 = vmul.f32 %v2286, %v2384
    %v2417 = vmul.f32 %v2291, %v2385
    %v2418 = vmul.f32 %v2296, %v2386
    %v2419 = vmul.f32 %v2301, %v2387
    %v2420 = vmul.f32 %v2306, %v2388
    %v2421 = vmul.f32 %v2311, %v2389
    %v2422 = vmul.f32 %v2316, %v2390
    %v2423 = vmul.f32 %v2321, %v2391
    %v2424 = vmul.f32 %v2326, %v2392
    %v2425 = vld [vmem:[%s7] sm:$0xff]
    %v2426 = vld [vmem:[%s7 + $0x8] sm:$0xff]
    %v2427 = vld [vmem:[%s7 + $0x10] sm:$0xff]
    %v2428 = vld [vmem:[%s7 + $0x18] sm:$0xff]
    %v2429 = vld [vmem:[%s7 + $0x20] sm:$0xff]
    %v2430 = vld [vmem:[%s7 + $0x28] sm:$0xff]
    %v2431 = vld [vmem:[%s7 + $0x30] sm:$0xff]
    %v2432 = vld [vmem:[%s7 + $0x38] sm:$0xff]
    %v2434 = vsel %vm552, %v2393, 0
    %v2437 = vsel %vm552, %v2394, 0
    %v2440 = vsel %vm552, %v2395, 0
    %v2443 = vsel %vm552, %v2396, 0
    %v2446 = vsel %vm552, %v2397, 0
    %v2449 = vsel %vm552, %v2398, 0
    %v2452 = vsel %vm552, %v2399, 0
    %v2455 = vsel %vm552, %v2400, 0
    %v2458 = vsel %vm552, %v2401, 0
    %v2461 = vsel %vm552, %v2402, 0
    %v2464 = vsel %vm552, %v2403, 0
    %v2467 = vsel %vm552, %v2404, 0
    %v2470 = vsel %vm552, %v2405, 0
    %v2473 = vsel %vm552, %v2406, 0
    %v2476 = vsel %vm552, %v2407, 0
    %v2479 = vsel %vm552, %v2408, 0
    %v2482 = vsel %vm552, %v2409, 0
    %v2485 = vsel %vm552, %v2410, 0
    %v2488 = vsel %vm552, %v2411, 0
    %v2491 = vsel %vm552, %v2412, 0
    %v2494 = vsel %vm552, %v2413, 0
    %v2497 = vsel %vm552, %v2414, 0
    %v2500 = vsel %vm552, %v2415, 0
    %v2503 = vsel %vm552, %v2416, 0
    %v2506 = vsel %vm552, %v2417, 0
    %v2509 = vsel %vm552, %v2418, 0
    %v2512 = vsel %vm552, %v2419, 0
    %v2515 = vsel %vm552, %v2420, 0
    %v2518 = vsel %vm552, %v2421, 0
    %v2521 = vsel %vm552, %v2422, 0
    %v2524 = vsel %vm552, %v2423, 0
    %v2527 = vsel %vm552, %v2424, 0
    %2529 = vmatprep.subr.mxu0 0.0
    %2530 = vmatpush1.msra.mxu0 %v2425
    %2531 = vmatprep.subr.mxu0 0.0
    %2532 = vmatpush1.msra.mxu0 %v2426
    %2533 = vmatprep.subr.mxu0 0.0
    %2534 = vmatpush1.msra.mxu0 %v2427
    %2535 = vmatprep.subr.mxu0 0.0
    %2536 = vmatpush1.msra.mxu0 %v2428
    %2537 = vmatprep.subr.mxu0 0.0
    %2538 = vmatpush1.msra.mxu0 %v2429
    %2539 = vmatprep.subr.mxu0 0.0
    %2540 = vmatpush1.msra.mxu0 %v2430
    %2541 = vmatprep.subr.mxu0 0.0
    %2542 = vmatpush1.msra.mxu0 %v2431
    %2543 = vmatprep.subr.mxu0 0.0
    %2544 = vmatpush1.msra.mxu0 %v2432
    %2545 = vmatprep.subr.mxu0 0.0
    %2546 = vmatpush1.msra.mxu0 0.0
    %2547 = vmatprep.subr.mxu0 0.0
    %2548 = vmatpush1.msra.mxu0 0.0
    %2549 = vmatprep.subr.mxu0 0.0
    %2550 = vmatpush1.msra.mxu0 0.0
    %2551 = vmatprep.subr.mxu0 0.0
    %2552 = vmatpush1.msra.mxu0 0.0
    %2553 = vmatprep.subr.mxu0 0.0
    %2554 = vmatpush1.msra.mxu0 0.0
    %2555 = vmatprep.subr.mxu0 0.0
    %2556 = vmatpush1.msra.mxu0 0.0
    %2557 = vmatprep.subr.mxu0 0.0
    %2558 = vmatpush1.msra.mxu0 0.0
    %2559 = vmatprep.subr.mxu0 0.0
    %2560 = vmatpush1.msra.mxu0 0.0
    %2561 = vmatprep.subr.mxu0 0.0
    %2562 = vmatpush1.msra.mxu0 0.0
    %2563 = vmatprep.subr.mxu0 0.0
    %2564 = vmatpush1.msra.mxu0 0.0
    %2565 = vmatprep.subr.mxu0 0.0
    %2566 = vmatpush1.msra.mxu0 0.0
    %2567 = vmatprep.subr.mxu0 0.0
    %2568 = vmatpush1.msra.mxu0 0.0
    %2569 = vmatprep.subr.mxu0 0.0
    %2570 = vmatpush1.msra.mxu0 0.0
    %2571 = vmatprep.subr.mxu0 0.0
    %2572 = vmatpush1.msra.mxu0 0.0
    %2573 = vmatprep.subr.mxu0 0.0
    %2574 = vmatpush1.msra.mxu0 0.0
    %2575 = vmatprep.subr.mxu0 0.0
    %2576 = vmatpush1.msra.mxu0 0.0
    %2577 = vmatprep.subr.mxu0 0.0
    %2578 = vmatpush1.msra.mxu0 0.0
    %2579 = vmatprep.subr.mxu0 0.0
    %2580 = vmatpush1.msra.mxu0 0.0
    %2581 = vmatprep.subr.mxu0 0.0
    %2582 = vmatpush1.msra.mxu0 0.0
    %2583 = vmatprep.subr.mxu0 0.0
    %2584 = vmatpush1.msra.mxu0 0.0
    %2585 = vmatprep.subr.mxu0 0.0
    %2586 = vmatpush1.msra.mxu0 0.0
    %2587 = vmatprep.subr.mxu0 0.0
    %2588 = vmatpush1.msra.mxu0 0.0
    %2589 = vmatprep.subr.mxu0 0.0
    %2590 = vmatpush1.msra.mxu0 0.0
    %2591 = vmatprep.subr.mxu0 0.0
    %2592 = vmatpush1.msra.mxu0 0.0
    %2593 = vmatprep.mubr.f32.mxu0 0.0
    %2594 = vmatmul.mubr.f32.gmra.mrb[0].mxu0 %v2434
    %v2595 = vpop.f32.mrb[0].mxu0
    %v2596 = vadd.f32 0.0, %v2595
    %v2597 = vpop.f32.mrb[0].mxu0
    %2598 = vmatprep.mubr.f32.mxu0 0.0
    %2599 = vmatmul.mubr.f32.gmra.mrb[0].mxu0 %v2437
    %v2600 = vpop.f32.mrb[0].mxu0
    %v2601 = vadd.f32 0.0, %v2600
    %v2602 = vpop.f32.mrb[0].mxu0
    %2603 = vmatprep.mubr.f32.mxu0 0.0
    %2604 = vmatmul.mubr.f32.gmra.mrb[0].mxu0 %v2440
    %v2605 = vpop.f32.mrb[0].mxu0
    %v2606 = vadd.f32 0.0, %v2605
    %v2607 = vpop.f32.mrb[0].mxu0
    %2608 = vmatprep.mubr.f32.mxu0 0.0
    %2609 = vmatmul.mubr.f32.gmra.mrb[0].mxu0 %v2443
    %v2610 = vpop.f32.mrb[0].mxu0
    %v2611 = vadd.f32 0.0, %v2610
    %v2612 = vpop.f32.mrb[0].mxu0
    %2613 = vmatprep.mubr.f32.mxu0 0.0
    %2614 = vmatmul.mubr.f32.gmra.mrb[0].mxu0 %v2446
    %v2615 = vpop.f32.mrb[0].mxu0
    %v2616 = vadd.f32 0.0, %v2615
    %v2617 = vpop.f32.mrb[0].mxu0
    %2618 = vmatprep.mubr.f32.mxu0 0.0
    %2619 = vmatmul.mubr.f32.gmra.mrb[0].mxu0 %v2449
    %v2620 = vpop.f32.mrb[0].mxu0
    %v2621 = vadd.f32 0.0, %v2620
    %v2622 = vpop.f32.mrb[0].mxu0
    %2623 = vmatprep.mubr.f32.mxu0 0.0
    %2624 = vmatmul.mubr.f32.gmra.mrb[0].mxu0 %v2452
    %v2625 = vpop.f32.mrb[0].mxu0
    %v2626 = vadd.f32 0.0, %v2625
    %v2627 = vpop.f32.mrb[0].mxu0
    %2628 = vmatprep.mubr.f32.mxu0 0.0
    %2629 = vmatmul.mubr.f32.gmra.mrb[0].mxu0 %v2455
    %v2630 = vpop.f32.mrb[0].mxu0
    %v2631 = vadd.f32 0.0, %v2630
    %v2632 = vpop.f32.mrb[0].mxu0
    %2633 = vmatprep.mubr.f32.mxu0 0.0
    %2634 = vmatmul.mubr.f32.gmra.mrb[0].mxu0 %v2458
    %v2635 = vpop.f32.mrb[0].mxu0
    %v2636 = vadd.f32 0.0, %v2635
    %v2637 = vpop.f32.mrb[0].mxu0
    %2638 = vmatprep.mubr.f32.mxu0 0.0
    %2639 = vmatmul.mubr.f32.gmra.mrb[0].mxu0 %v2461
    %v2640 = vpop.f32.mrb[0].mxu0
    %v2641 = vadd.f32 0.0, %v2640
    %v2642 = vpop.f32.mrb[0].mxu0
    %2643 = vmatprep.mubr.f32.mxu0 0.0
    %2644 = vmatmul.mubr.f32.gmra.mrb[0].mxu0 %v2464
    %v2645 = vpop.f32.mrb[0].mxu0
    %v2646 = vadd.f32 0.0, %v2645
    %v2647 = vpop.f32.mrb[0].mxu0
    %2648 = vmatprep.mubr.f32.mxu0 0.0
    %2649 = vmatmul.mubr.f32.gmra.mrb[0].mxu0 %v2467
    %v2650 = vpop.f32.mrb[0].mxu0
    %v2651 = vadd.f32 0.0, %v2650
    %v2652 = vpop.f32.mrb[0].mxu0
    %2653 = vmatprep.mubr.f32.mxu0 0.0
    %2654 = vmatmul.mubr.f32.gmra.mrb[0].mxu0 %v2470
    %v2655 = vpop.f32.mrb[0].mxu0
    %v2656 = vadd.f32 0.0, %v2655
    %v2657 = vpop.f32.mrb[0].mxu0
    %2658 = vmatprep.mubr.f32.mxu0 0.0
    %2659 = vmatmul.mubr.f32.gmra.mrb[0].mxu0 %v2473
    %v2660 = vpop.f32.mrb[0].mxu0
    %v2661 = vadd.f32 0.0, %v2660
    %v2662 = vpop.f32.mrb[0].mxu0
    %2663 = vmatprep.mubr.f32.mxu0 0.0
    %2664 = vmatmul.mubr.f32.gmra.mrb[0].mxu0 %v2476
    %v2665 = vpop.f32.mrb[0].mxu0
    %v2666 = vadd.f32 0.0, %v2665
    %v2667 = vpop.f32.mrb[0].mxu0
    %2668 = vmatprep.mubr.f32.mxu0 0.0
    %2669 = vmatmul.mubr.f32.gmra.mrb[0].mxu0 %v2479
    %v2670 = vpop.f32.mrb[0].mxu0
    %v2671 = vadd.f32 0.0, %v2670
    %v2672 = vpop.f32.mrb[0].mxu0
    %2673 = vmatprep.mubr.f32.mxu0 0.0
    %2674 = vmatmul.mubr.f32.gmra.mrb[0].mxu0 %v2482
    %v2675 = vpop.f32.mrb[0].mxu0
    %v2676 = vadd.f32 0.0, %v2675
    %v2677 = vpop.f32.mrb[0].mxu0
    %2678 = vmatprep.mubr.f32.mxu0 0.0
    %2679 = vmatmul.mubr.f32.gmra.mrb[0].mxu0 %v2485
    %v2680 = vpop.f32.mrb[0].mxu0
    %v2681 = vadd.f32 0.0, %v2680
    %v2682 = vpop.f32.mrb[0].mxu0
    %2683 = vmatprep.mubr.f32.mxu0 0.0
    %2684 = vmatmul.mubr.f32.gmra.mrb[0].mxu0 %v2488
    %v2685 = vpop.f32.mrb[0].mxu0
    %v2686 = vadd.f32 0.0, %v2685
    %v2687 = vpop.f32.mrb[0].mxu0
    %2688 = vmatprep.mubr.f32.mxu0 0.0
    %2689 = vmatmul.mubr.f32.gmra.mrb[0].mxu0 %v2491
    %v2690 = vpop.f32.mrb[0].mxu0
    %v2691 = vadd.f32 0.0, %v2690
    %v2692 = vpop.f32.mrb[0].mxu0
    %2693 = vmatprep.mubr.f32.mxu0 0.0
    %2694 = vmatmul.mubr.f32.gmra.mrb[0].mxu0 %v2494
    %v2695 = vpop.f32.mrb[0].mxu0
    %v2696 = vadd.f32 0.0, %v2695
    %v2697 = vpop.f32.mrb[0].mxu0
    %2698 = vmatprep.mubr.f32.mxu0 0.0
    %2699 = vmatmul.mubr.f32.gmra.mrb[0].mxu0 %v2497
    %v2700 = vpop.f32.mrb[0].mxu0
    %v2701 = vadd.f32 0.0, %v2700
    %v2702 = vpop.f32.mrb[0].mxu0
    %2703 = vmatprep.mubr.f32.mxu0 0.0
    %2704 = vmatmul.mubr.f32.gmra.mrb[0].mxu0 %v2500
    %v2705 = vpop.f32.mrb[0].mxu0
    %v2706 = vadd.f32 0.0, %v2705
    %v2707 = vpop.f32.mrb[0].mxu0
    %2708 = vmatprep.mubr.f32.mxu0 0.0
    %2709 = vmatmul.mubr.f32.gmra.mrb[0].mxu0 %v2503
    %v2710 = vpop.f32.mrb[0].mxu0
    %v2711 = vadd.f32 0.0, %v2710
    %v2712 = vpop.f32.mrb[0].mxu0
    %2713 = vmatprep.mubr.f32.mxu0 0.0
    %2714 = vmatmul.mubr.f32.gmra.mrb[0].mxu0 %v2506
    %v2715 = vpop.f32.mrb[0].mxu0
    %v2716 = vadd.f32 0.0, %v2715
    %v2717 = vpop.f32.mrb[0].mxu0
    %2718 = vmatprep.mubr.f32.mxu0 0.0
    %2719 = vmatmul.mubr.f32.gmra.mrb[0].mxu0 %v2509
    %v2720 = vpop.f32.mrb[0].mxu0
    %v2721 = vadd.f32 0.0, %v2720
    %v2722 = vpop.f32.mrb[0].mxu0
    %2723 = vmatprep.mubr.f32.mxu0 0.0
    %2724 = vmatmul.mubr.f32.gmra.mrb[0].mxu0 %v2512
    %v2725 = vpop.f32.mrb[0].mxu0
    %v2726 = vadd.f32 0.0, %v2725
    %v2727 = vpop.f32.mrb[0].mxu0
    %2728 = vmatprep.mubr.f32.mxu0 0.0
    %2729 = vmatmul.mubr.f32.gmra.mrb[0].mxu0 %v2515
    %v2730 = vpop.f32.mrb[0].mxu0
    %v2731 = vadd.f32 0.0, %v2730
    %v2732 = vpop.f32.mrb[0].mxu0
    %2733 = vmatprep.mubr.f32.mxu0 0.0
    %2734 = vmatmul.mubr.f32.gmra.mrb[0].mxu0 %v2518
    %v2735 = vpop.f32.mrb[0].mxu0
    %v2736 = vadd.f32 0.0, %v2735
    %v2737 = vpop.f32.mrb[0].mxu0
    %2738 = vmatprep.mubr.f32.mxu0 0.0
    %2739 = vmatmul.mubr.f32.gmra.mrb[0].mxu0 %v2521
    %v2740 = vpop.f32.mrb[0].mxu0
    %v2741 = vadd.f32 0.0, %v2740
    %v2742 = vpop.f32.mrb[0].mxu0
    %2743 = vmatprep.mubr.f32.mxu0 0.0
    %2744 = vmatmul.mubr.f32.gmra.mrb[0].mxu0 %v2524
    %v2745 = vpop.f32.mrb[0].mxu0
    %v2746 = vadd.f32 0.0, %v2745
    %v2747 = vpop.f32.mrb[0].mxu0
    %2748 = vmatprep.mubr.f32.mxu0 0.0
    %2749 = vmatmul.mubr.f32.gmra.mrb[0].mxu0 %v2527
    %v2750 = vpop.f32.mrb[0].mxu0
    %v2751 = vadd.f32 0.0, %v2750
    %v2752 = vpop.f32.mrb[0].mxu0
    %2753 = vdwg.mxu0
    %2754 = vst.msk [vmem:[#allocation14] sm:$0xff] %vm183, %v2596
    %2755 = vst.msk [vmem:[#allocation14 + $0x8] sm:$0xff] %vm183, %v2601
    %2756 = vst.msk [vmem:[#allocation14 + $0x10] sm:$0xff] %vm183, %v2606
    %2757 = vst.msk [vmem:[#allocation14 + $0x18] sm:$0xff] %vm183, %v2611
    %2758 = vst.msk [vmem:[#allocation14 + $0x20] sm:$0xff] %vm183, %v2616
    %2759 = vst.msk [vmem:[#allocation14 + $0x28] sm:$0xff] %vm183, %v2621
    %2760 = vst.msk [vmem:[#allocation14 + $0x30] sm:$0xff] %vm183, %v2626
    %2761 = vst.msk [vmem:[#allocation14 + $0x38] sm:$0xff] %vm183, %v2631
    %2762 = vst.msk [vmem:[#allocation14 + $0x40] sm:$0xff] %vm183, %v2636
    %2763 = vst.msk [vmem:[#allocation14 + $0x48] sm:$0xff] %vm183, %v2641
    %2764 = vst.msk [vmem:[#allocation14 + $0x50] sm:$0xff] %vm183, %v2646
    %2765 = vst.msk [vmem:[#allocation14 + $0x58] sm:$0xff] %vm183, %v2651
    %2766 = vst.msk [vmem:[#allocation14 + $0x60] sm:$0xff] %vm183, %v2656
    %2767 = vst.msk [vmem:[#allocation14 + $0x68] sm:$0xff] %vm183, %v2661
    %2768 = vst.msk [vmem:[#allocation14 + $0x70] sm:$0xff] %vm183, %v2666
    %2769 = vst.msk [vmem:[#allocation14 + $0x78] sm:$0xff] %vm183, %v2671
    %2770 = vst.msk [vmem:[#allocation14 + $0x80] sm:$0xff] %vm183, %v2676
    %2771 = vst.msk [vmem:[#allocation14 + $0x88] sm:$0xff] %vm183, %v2681
    %2772 = vst.msk [vmem:[#allocation14 + $0x90] sm:$0xff] %vm183, %v2686
    %2773 = vst.msk [vmem:[#allocation14 + $0x98] sm:$0xff] %vm183, %v2691
    %2774 = vst.msk [vmem:[#allocation14 + $0xa0] sm:$0xff] %vm183, %v2696
    %2775 = vst.msk [vmem:[#allocation14 + $0xa8] sm:$0xff] %vm183, %v2701
    %2776 = vst.msk [vmem:[#allocation14 + $0xb0] sm:$0xff] %vm183, %v2706
    %2777 = vst.msk [vmem:[#allocation14 + $0xb8] sm:$0xff] %vm183, %v2711
    %2778 = vst.msk [vmem:[#allocation14 + $0xc0] sm:$0xff] %vm183, %v2716
    %2779 = vst.msk [vmem:[#allocation14 + $0xc8] sm:$0xff] %vm183, %v2721
    %2780 = vst.msk [vmem:[#allocation14 + $0xd0] sm:$0xff] %vm183, %v2726
    %2781 = vst.msk [vmem:[#allocation14 + $0xd8] sm:$0xff] %vm183, %v2731
    %2782 = vst.msk [vmem:[#allocation14 + $0xe0] sm:$0xff] %vm183, %v2736
    %2783 = vst.msk [vmem:[#allocation14 + $0xe8] sm:$0xff] %vm183, %v2741
    %2784 = vst.msk [vmem:[#allocation14 + $0xf0] sm:$0xff] %vm183, %v2746
    %2785 = vst.msk [vmem:[#allocation14 + $0xf8] sm:$0xff] %vm183, %v2751
    // Predicated region
    $region98: #{tpu_custom_call.1} parent=1 // pred_check
      _
    $region99: #{tpu_custom_call.1} parent=1 // pred_check_branch
      %2787 = sbr.rel (0) target = $region101
    $region100: #{tpu_custom_call.1} parent=1 // pred_region
      _
    $region101: #{tpu_custom_call.1} parent=1 // pred_fallthru
      _
    // Predicated region
    $region102: #{tpu_custom_call.1} parent=1 // pred_check
      _
    $region103: #{tpu_custom_call.1} parent=1 // pred_check_branch
      %2789 = sbr.rel (0) target = $region105
    $region104: #{tpu_custom_call.1} parent=1 // pred_region
      %s2791 = ssub.s32 4096, 4096
      %2792 = vsyncadd [#allocation5], %s2791
      %s2793 = sshll.u32 [#allocation14], 4
      %s2794 = int_to_ptr.vmem [resolvable:$true] %s2793
      %2799 = dma.vmem_to_hbm [thread:$0]  %s2794, 4096, %s19, [#allocation5], 128, 128, 8
    $region105: #{tpu_custom_call.1} parent=1 // pred_fallthru
      _
    // Predicated region
    $region106: #{tpu_custom_call.1} parent=1 // pred_check
      _
    $region107: #{tpu_custom_call.1} parent=1 // pred_check_branch
      %2801 = sbr.rel (0) target = $region109
    $region108: #{tpu_custom_call.1} parent=1 // pred_region
      _
    $region109: #{tpu_custom_call.1} parent=1 // pred_fallthru
      _
    // Predicated region
    $region110: #{tpu_custom_call.1} parent=1 // pred_check
      _
    $region111: #{tpu_custom_call.1} parent=1 // pred_check_branch
      %2803 = sbr.rel (0) target = $region113
    $region112: #{tpu_custom_call.1} parent=1 // pred_region
      %2804 = dma.done [#allocation5], 4096
    $region113: #{tpu_custom_call.1} parent=1 // pred_fallthru
      _
    %2805 = vsyncpa [#allocation4], 1
    %2806 = vsyncpa [#allocation7], 1
    %2807 = vsyncpa [#allocation10], 1
    %2808 = vsyncpa [#allocation13], 1
    %2809 = vsyncpa [#allocation5], 1

</llo_original>
